<compile_context>
chip_gen: v7x
topology: tpu7x:2x2x1
jax: 0.10.0
libtpu: 0.0.40
codegen_flags: <defaults>
</compile_context>

<pallas_src>
import functools

import jax
import jax.numpy as jnp
import numpy as np
from jax.experimental import pallas as pl
from jax.experimental.pallas import tpu as pltpu


def _conv_relu_pool_kernel(x_ref, w_ref, b_ref, o_ref, patch_ref, *, K, W_pad, C_in):
    # x_ref:     (C_in, M_lanes)      spatially padded input, (n,h,w) flattened on lanes
    # w_ref:     (C_out, K*K*C_in)    weights, row order (kh, kw, c_in)
    # b_ref:     (C_out, 1)
    # o_ref:     (C_out, M_lanes)     pooled output on the same flattened padded grid
    # patch_ref: (K*K*C_in, M_lanes)  VMEM scratch: im2col patch slab
    M_lanes = x_ref.shape[1]
    x = x_ref[...]

    # ---- in-kernel im2col: one XLU lane roll per (kh, kw) tap ----
    for kh in range(K):
        for kw in range(K):
            t = kh * K + kw
            off = kh * W_pad + kw
            tap = x if off == 0 else pltpu.roll(x, shift=M_lanes - off, axis=1)
            patch_ref[pl.ds(t * C_in, C_in), :] = tap

    # ---- conv as a single MXU matmul with f32 accumulation ----
    conv = jnp.dot(w_ref[...], patch_ref[...],
                   preferred_element_type=jnp.float32,
                   precision=jax.lax.Precision.HIGHEST)      # (C_out, M_lanes)

    # Bias + ReLU, lane-dense.
    conv = jnp.maximum(conv + b_ref[...], 0.0)

    # ---- separable MaxPool2d(K, stride=1) via full-width lane rolls ----
    hmax = conv
    for kw in range(1, K):
        hmax = jnp.maximum(hmax, pltpu.roll(conv, shift=M_lanes - kw, axis=1))
    vmax = hmax
    for kh in range(1, K):
        vmax = jnp.maximum(vmax, pltpu.roll(hmax, shift=M_lanes - kh * W_pad, axis=1))

    # Unmasked, lane-dense store of the full padded width.
    o_ref[...] = vmax.astype(o_ref.dtype)


def conv_relu_pool(x_nchw, w_oihw, bias, k, stride=1):
    """Pallas implementation of ConvReluPool.forward. Takes/returns NCHW."""
    assert k % 2 == 0, "module asserts even kernel size"
    assert stride == 1  # TODO(synk): general stride unused by the module's forward
    N, C_in, H, W = x_nchw.shape
    C_out = w_oihw.shape[0]
    pad = (k - 1) // 2
    H_pad, W_pad = H + 2 * pad, W + 2 * pad
    H_out, W_out = H_pad - k + 1, W_pad - k + 1        # conv output
    H_pool, W_pool = H_out - k + 1, W_out - k + 1      # maxpool(k, stride=1) output
    M_pad = N * H_pad * W_pad                          # flattened padded grid
    M_lanes = ((M_pad + 127) // 128) * 128             # lane-dense (128 multiple)

    # ---- minimal wrapper-side layout plumbing (no im2col here anymore) ----
    x_sp = jnp.pad(x_nchw, ((0, 0), (0, 0), (pad, pad), (pad, pad)))
    x_flat = jnp.transpose(x_sp, (1, 0, 2, 3)).reshape(C_in, M_pad)
    x_flat = jnp.pad(x_flat, ((0, 0), (0, M_lanes - M_pad))).astype(jnp.float32)
    # Weight rows ordered (kh, kw, c_in) to match the tap-major patch slab.
    w2 = jnp.transpose(w_oihw, (0, 2, 3, 1)).reshape(C_out, k * k * C_in).astype(jnp.float32)
    b2 = bias.reshape(C_out, 1).astype(jnp.float32)

    kernel = functools.partial(_conv_relu_pool_kernel, K=k, W_pad=W_pad, C_in=C_in)

    out_flat = pl.pallas_call(
        kernel,
        out_shape=jax.ShapeDtypeStruct((C_out, M_lanes), x_nchw.dtype),
        in_specs=[pl.BlockSpec(memory_space=pltpu.MemorySpace.VMEM),
                  pl.BlockSpec(memory_space=pltpu.MemorySpace.VMEM),
                  pl.BlockSpec(memory_space=pltpu.MemorySpace.VMEM)],
        out_specs=pl.BlockSpec(memory_space=pltpu.MemorySpace.VMEM),
        scratch_shapes=[pltpu.VMEM((k * k * C_in, M_lanes), jnp.float32)],
    )(x_flat, w2, b2)

    # Valid pooled entries sit at m = n*H_pad*W_pad + h*W_pad + w with h<H_pool, w<W_pool;
    # everything else (row/image wrap-around and lane padding) is discarded here.
    out = out_flat[:, :M_pad].reshape(C_out, N, H_pad, W_pad)[:, :, :H_pool, :W_pool]
    return jnp.transpose(out, (1, 0, 2, 3))            # NCHW


def _reference(x_nchw, w_oihw, bias, k):
    """Plain-JAX reference (matches PyTorch Conv2d/MaxPool2d semantics)."""
    pad = (k - 1) // 2
    conv = jax.lax.conv_general_dilated(
        x_nchw, w_oihw, window_strides=(1, 1),
        padding=[(pad, pad), (pad, pad)],
        dimension_numbers=('NCHW', 'OIHW', 'NCHW'),
        precision=jax.lax.Precision.HIGHEST)
    conv = conv + bias.reshape(1, -1, 1, 1)
    relu = jnp.maximum(conv, 0.0)
    return jax.lax.reduce_window(
        relu, -jnp.inf, jax.lax.max,
        window_dimensions=(1, 1, k, k), window_strides=(1, 1, 1, 1),
        padding='VALID')


if __name__ == "__main__":
    # Small shapes consistent with the module: batch=2, fIn=4, fOut=8, 16x16, k=4.
    N, fIn, fOut, H, W, k = 2, 4, 8, 16, 16, 4

    key = jax.random.PRNGKey(0)
    kx, kw, kb = jax.random.split(key, 3)
    x = jax.random.normal(kx, (N, fIn, H, W), dtype=jnp.float32)
    # Deterministic synthetic parameters (PyTorch Conv2d weight is OIHW, bias (O,)).
    weight = jax.random.normal(kw, (fOut, fIn, k, k), dtype=jnp.float32) * 0.1
    bias = jax.random.normal(kb, (fOut,), dtype=jnp.float32) * 0.1

    out = jax.block_until_ready(conv_relu_pool(x, weight, bias, k))
    ref = jax.block_until_ready(_reference(x, weight, bias, k))

    expected_hw = H + 2 * ((k - 1) // 2) - k + 1 - k + 1
    assert out.shape == ref.shape == (N, fOut, expected_hw, expected_hw)
    np.testing.assert_allclose(np.asarray(out), np.asarray(ref), rtol=1e-4, atol=1e-4)

    print("KERNEL_OK")
</pallas_src>

<mosaic_0001>
module attributes {stable_mosaic.version = 11 : i64} {
  func.func @_conv_relu_pool_kernel(%arg0: memref<4x768xf32, #tpu.memory_space<vmem>>, %arg1: memref<8x64xf32, #tpu.memory_space<vmem>>, %arg2: memref<8x1xf32, #tpu.memory_space<vmem>>, %arg3: memref<8x768xf32, #tpu.memory_space<vmem>>, %arg4: memref<64x768xf32, #tpu.memory_space<vmem>>) attributes {dimension_semantics = [], scalar_prefetch = 0 : i64, scratch_operands = 1 : i64, tpu.core_type = #tpu.core_type<tc>} {
    %c0 = arith.constant 0 : index
    %c0_0 = arith.constant 0 : index
    %0 = vector.load %arg0[%c0, %c0_0] : memref<4x768xf32, #tpu.memory_space<vmem>>, vector<4x768xf32>
    %c0_1 = arith.constant 0 : index
    %c0_2 = arith.constant 0 : index
    %1 = vector.load %arg4[%c0_1, %c0_2] : memref<64x768xf32, #tpu.memory_space<vmem>>, vector<4x768xf32>
    tpu.vector_store %arg4[%c0_1, %c0_2], %0 {strides = array<i32>} : memref<64x768xf32, #tpu.memory_space<vmem>>, vector<4x768xf32>,
    %c767_i32 = arith.constant 767 : i32
    %2 = tpu.dynamic_rotate %0 by %c767_i32 dim 1 : vector<4x768xf32>, i32 -> vector<4x768xf32>
    %c4 = arith.constant 4 : index
    %c0_3 = arith.constant 0 : index
    %3 = vector.load %arg4[%c4, %c0_3] : memref<64x768xf32, #tpu.memory_space<vmem>>, vector<4x768xf32>
    tpu.vector_store %arg4[%c4, %c0_3], %2 {strides = array<i32>} : memref<64x768xf32, #tpu.memory_space<vmem>>, vector<4x768xf32>,
    %c766_i32 = arith.constant 766 : i32
    %4 = tpu.dynamic_rotate %0 by %c766_i32 dim 1 : vector<4x768xf32>, i32 -> vector<4x768xf32>
    %c8 = arith.constant 8 : index
    %c0_4 = arith.constant 0 : index
    %5 = vector.load %arg4[%c8, %c0_4] : memref<64x768xf32, #tpu.memory_space<vmem>>, vector<4x768xf32>
    tpu.vector_store %arg4[%c8, %c0_4], %4 {strides = array<i32>} : memref<64x768xf32, #tpu.memory_space<vmem>>, vector<4x768xf32>,
    %c765_i32 = arith.constant 765 : i32
    %6 = tpu.dynamic_rotate %0 by %c765_i32 dim 1 : vector<4x768xf32>, i32 -> vector<4x768xf32>
    %c12 = arith.constant 12 : index
    %c0_5 = arith.constant 0 : index
    %7 = vector.load %arg4[%c12, %c0_5] : memref<64x768xf32, #tpu.memory_space<vmem>>, vector<4x768xf32>
    tpu.vector_store %arg4[%c12, %c0_5], %6 {strides = array<i32>} : memref<64x768xf32, #tpu.memory_space<vmem>>, vector<4x768xf32>,
    %c750_i32 = arith.constant 750 : i32
    %8 = tpu.dynamic_rotate %0 by %c750_i32 dim 1 : vector<4x768xf32>, i32 -> vector<4x768xf32>
    %c16 = arith.constant 16 : index
    %c0_6 = arith.constant 0 : index
    %9 = vector.load %arg4[%c16, %c0_6] : memref<64x768xf32, #tpu.memory_space<vmem>>, vector<4x768xf32>
    tpu.vector_store %arg4[%c16, %c0_6], %8 {strides = array<i32>} : memref<64x768xf32, #tpu.memory_space<vmem>>, vector<4x768xf32>,
    %c749_i32 = arith.constant 749 : i32
    %10 = tpu.dynamic_rotate %0 by %c749_i32 dim 1 : vector<4x768xf32>, i32 -> vector<4x768xf32>
    %c20 = arith.constant 20 : index
    %c0_7 = arith.constant 0 : index
    %11 = vector.load %arg4[%c20, %c0_7] : memref<64x768xf32, #tpu.memory_space<vmem>>, vector<4x768xf32>
    tpu.vector_store %arg4[%c20, %c0_7], %10 {strides = array<i32>} : memref<64x768xf32, #tpu.memory_space<vmem>>, vector<4x768xf32>,
    %c748_i32 = arith.constant 748 : i32
    %12 = tpu.dynamic_rotate %0 by %c748_i32 dim 1 : vector<4x768xf32>, i32 -> vector<4x768xf32>
    %c24 = arith.constant 24 : index
    %c0_8 = arith.constant 0 : index
    %13 = vector.load %arg4[%c24, %c0_8] : memref<64x768xf32, #tpu.memory_space<vmem>>, vector<4x768xf32>
    tpu.vector_store %arg4[%c24, %c0_8], %12 {strides = array<i32>} : memref<64x768xf32, #tpu.memory_space<vmem>>, vector<4x768xf32>,
    %c747_i32 = arith.constant 747 : i32
    %14 = tpu.dynamic_rotate %0 by %c747_i32 dim 1 : vector<4x768xf32>, i32 -> vector<4x768xf32>
    %c28 = arith.constant 28 : index
    %c0_9 = arith.constant 0 : index
    %15 = vector.load %arg4[%c28, %c0_9] : memref<64x768xf32, #tpu.memory_space<vmem>>, vector<4x768xf32>
    tpu.vector_store %arg4[%c28, %c0_9], %14 {strides = array<i32>} : memref<64x768xf32, #tpu.memory_space<vmem>>, vector<4x768xf32>,
    %c732_i32 = arith.constant 732 : i32
    %16 = tpu.dynamic_rotate %0 by %c732_i32 dim 1 : vector<4x768xf32>, i32 -> vector<4x768xf32>
    %c32 = arith.constant 32 : index
    %c0_10 = arith.constant 0 : index
    %17 = vector.load %arg4[%c32, %c0_10] : memref<64x768xf32, #tpu.memory_space<vmem>>, vector<4x768xf32>
    tpu.vector_store %arg4[%c32, %c0_10], %16 {strides = array<i32>} : memref<64x768xf32, #tpu.memory_space<vmem>>, vector<4x768xf32>,
    %c731_i32 = arith.constant 731 : i32
    %18 = tpu.dynamic_rotate %0 by %c731_i32 dim 1 : vector<4x768xf32>, i32 -> vector<4x768xf32>
    %c36 = arith.constant 36 : index
    %c0_11 = arith.constant 0 : index
    %19 = vector.load %arg4[%c36, %c0_11] : memref<64x768xf32, #tpu.memory_space<vmem>>, vector<4x768xf32>
    tpu.vector_store %arg4[%c36, %c0_11], %18 {strides = array<i32>} : memref<64x768xf32, #tpu.memory_space<vmem>>, vector<4x768xf32>,
    %c730_i32 = arith.constant 730 : i32
    %20 = tpu.dynamic_rotate %0 by %c730_i32 dim 1 : vector<4x768xf32>, i32 -> vector<4x768xf32>
    %c40 = arith.constant 40 : index
    %c0_12 = arith.constant 0 : index
    %21 = vector.load %arg4[%c40, %c0_12] : memref<64x768xf32, #tpu.memory_space<vmem>>, vector<4x768xf32>
    tpu.vector_store %arg4[%c40, %c0_12], %20 {strides = array<i32>} : memref<64x768xf32, #tpu.memory_space<vmem>>, vector<4x768xf32>,
    %c729_i32 = arith.constant 729 : i32
    %22 = tpu.dynamic_rotate %0 by %c729_i32 dim 1 : vector<4x768xf32>, i32 -> vector<4x768xf32>
    %c44 = arith.constant 44 : index
    %c0_13 = arith.constant 0 : index
    %23 = vector.load %arg4[%c44, %c0_13] : memref<64x768xf32, #tpu.memory_space<vmem>>, vector<4x768xf32>
    tpu.vector_store %arg4[%c44, %c0_13], %22 {strides = array<i32>} : memref<64x768xf32, #tpu.memory_space<vmem>>, vector<4x768xf32>,
    %c714_i32 = arith.constant 714 : i32
    %24 = tpu.dynamic_rotate %0 by %c714_i32 dim 1 : vector<4x768xf32>, i32 -> vector<4x768xf32>
    %c48 = arith.constant 48 : index
    %c0_14 = arith.constant 0 : index
    %25 = vector.load %arg4[%c48, %c0_14] : memref<64x768xf32, #tpu.memory_space<vmem>>, vector<4x768xf32>
    tpu.vector_store %arg4[%c48, %c0_14], %24 {strides = array<i32>} : memref<64x768xf32, #tpu.memory_space<vmem>>, vector<4x768xf32>,
    %c713_i32 = arith.constant 713 : i32
    %26 = tpu.dynamic_rotate %0 by %c713_i32 dim 1 : vector<4x768xf32>, i32 -> vector<4x768xf32>
    %c52 = arith.constant 52 : index
    %c0_15 = arith.constant 0 : index
    %27 = vector.load %arg4[%c52, %c0_15] : memref<64x768xf32, #tpu.memory_space<vmem>>, vector<4x768xf32>
    tpu.vector_store %arg4[%c52, %c0_15], %26 {strides = array<i32>} : memref<64x768xf32, #tpu.memory_space<vmem>>, vector<4x768xf32>,
    %c712_i32 = arith.constant 712 : i32
    %28 = tpu.dynamic_rotate %0 by %c712_i32 dim 1 : vector<4x768xf32>, i32 -> vector<4x768xf32>
    %c56 = arith.constant 56 : index
    %c0_16 = arith.constant 0 : index
    %29 = vector.load %arg4[%c56, %c0_16] : memref<64x768xf32, #tpu.memory_space<vmem>>, vector<4x768xf32>
    tpu.vector_store %arg4[%c56, %c0_16], %28 {strides = array<i32>} : memref<64x768xf32, #tpu.memory_space<vmem>>, vector<4x768xf32>,
    %c711_i32 = arith.constant 711 : i32
    %30 = tpu.dynamic_rotate %0 by %c711_i32 dim 1 : vector<4x768xf32>, i32 -> vector<4x768xf32>
    %c60 = arith.constant 60 : index
    %c0_17 = arith.constant 0 : index
    %31 = vector.load %arg4[%c60, %c0_17] : memref<64x768xf32, #tpu.memory_space<vmem>>, vector<4x768xf32>
    tpu.vector_store %arg4[%c60, %c0_17], %30 {strides = array<i32>} : memref<64x768xf32, #tpu.memory_space<vmem>>, vector<4x768xf32>,
    %c0_18 = arith.constant 0 : index
    %c0_19 = arith.constant 0 : index
    %32 = vector.load %arg1[%c0_18, %c0_19] : memref<8x64xf32, #tpu.memory_space<vmem>>, vector<8x64xf32>
    %c0_20 = arith.constant 0 : index
    %c0_21 = arith.constant 0 : index
    %33 = vector.load %arg4[%c0_20, %c0_21] : memref<64x768xf32, #tpu.memory_space<vmem>>, vector<64x768xf32>
    %cst = arith.constant dense<0.000000e+00> : vector<8x768xf32>
    %34 = tpu.matmul %32, %33, %cst {dimension_numbers = #tpu.dot_dimension_numbers<[1], [0], [0], [1], [0, 0, 1, 1], [], []>, precision = #tpu.contract_precision<fp32>} : vector<8x64xf32>, vector<64x768xf32>, vector<8x768xf32> -> vector<8x768xf32>
    %c0_22 = arith.constant 0 : index
    %c0_23 = arith.constant 0 : index
    %35 = vector.load %arg2[%c0_22, %c0_23] : memref<8x1xf32, #tpu.memory_space<vmem>>, vector<8x1xf32>
    %36 = vector.broadcast %35 : vector<8x1xf32> to vector<8x768xf32>
    %37 = arith.addf %34, %36 : vector<8x768xf32>
    %cst_24 = arith.constant 0.000000e+00 : f32
    %38 = vector.broadcast %cst_24 : f32 to vector<8x768xf32>
    %39 = arith.maximumf %37, %38 : vector<8x768xf32>
    %c767_i32_25 = arith.constant 767 : i32
    %40 = tpu.dynamic_rotate %39 by %c767_i32_25 dim 1 : vector<8x768xf32>, i32 -> vector<8x768xf32>
    %41 = arith.maximumf %39, %40 : vector<8x768xf32>
    %c766_i32_26 = arith.constant 766 : i32
    %42 = tpu.dynamic_rotate %39 by %c766_i32_26 dim 1 : vector<8x768xf32>, i32 -> vector<8x768xf32>
    %43 = arith.maximumf %41, %42 : vector<8x768xf32>
    %c765_i32_27 = arith.constant 765 : i32
    %44 = tpu.dynamic_rotate %39 by %c765_i32_27 dim 1 : vector<8x768xf32>, i32 -> vector<8x768xf32>
    %45 = arith.maximumf %43, %44 : vector<8x768xf32>
    %c750_i32_28 = arith.constant 750 : i32
    %46 = tpu.dynamic_rotate %45 by %c750_i32_28 dim 1 : vector<8x768xf32>, i32 -> vector<8x768xf32>
    %47 = arith.maximumf %45, %46 : vector<8x768xf32>
    %c732_i32_29 = arith.constant 732 : i32
    %48 = tpu.dynamic_rotate %45 by %c732_i32_29 dim 1 : vector<8x768xf32>, i32 -> vector<8x768xf32>
    %49 = arith.maximumf %47, %48 : vector<8x768xf32>
    %c714_i32_30 = arith.constant 714 : i32
    %50 = tpu.dynamic_rotate %45 by %c714_i32_30 dim 1 : vector<8x768xf32>, i32 -> vector<8x768xf32>
    %51 = arith.maximumf %49, %50 : vector<8x768xf32>
    %c0_31 = arith.constant 0 : index
    %c0_32 = arith.constant 0 : index
    %52 = vector.load %arg3[%c0_31, %c0_32] : memref<8x768xf32, #tpu.memory_space<vmem>>, vector<8x768xf32>
    tpu.vector_store %arg3[%c0_31, %c0_32], %51 {strides = array<i32>} : memref<8x768xf32, #tpu.memory_space<vmem>>, vector<8x768xf32>,
    return
  }
}

</mosaic_0001>

<llo_original>
// kernel: tpu_custom_call.1
$region0: #{tpu_custom_call.1}
  #allocation0 [shape = 'u32[]', space=smem, size = 0x4, offset = 0x4, fixed_abs, tag = 'smem constant byte address 0x4 - core index']
  #allocation1 [shape = 'u32[144,128]{1,0:T(1,128)}', space=vmem, size = 0x12000, scoped, tag = 'internal scratch']
  #allocation2 [shape = 'f32[64,768]{1,0:T(8,128)}', space=vmem, size = 0x30000, scoped, tag = 'scratch operand']
  %s0 = inlined_call_operand.hbm [shape: f32[4,768], index: 0, kind: input, shape index: {}]
  %s1 = inlined_call_operand.vmem [shape: f32[8,64], index: 1, kind: input, shape index: {}]
  %s2 = inlined_call_operand.vmem [shape: f32[8,1], index: 2, kind: input, shape index: {}]
  %s3 = inlined_call_operand.hbm [shape: f32[8,768], index: 3, kind: output, shape index: {}]
  %s4 = sld [smem:[#allocation0]]
  $region26: #{tpu_custom_call.1} parent=0
    _
  %s6 = ssub.s32 1, %s4
  %s7 = scalar_select 0, %s6, %s4
  $region1: #{tpu_custom_call.1} parent=0
    #allocation3 [shape = 'u8[12288]{0}', space=vmem, size = 0x3000, scoped, tag = 'input window, operand 0, single buffered']
    #allocation4 [shape = 's32[1]{0}', space=sflag, size = 0x4, scoped, tag = 'scoped memory for tpu_custom_call.1']
    #allocation5 [shape = 's32[1]{0}', space=sflag, size = 0x4, scoped, tag = 'scoped memory for tpu_custom_call.1']
    #allocation6 [shape = 'u8[24576]{0}', space=vmem, size = 0x6000, scoped, tag = 'output window, operand 0, single buffered']
    %8 = vsyncpa [#allocation4], 0
    %9 = vsyncpa [#allocation5], 0
    // Predicated region
    $region2: #{tpu_custom_call.1} parent=1 // pred_check
      _
    $region3: #{tpu_custom_call.1} parent=1 // pred_check_branch
      %11 = sbr.rel (0) target = $region5
    $region4: #{tpu_custom_call.1} parent=1 // pred_region
      %s13 = ssub.s32 384, 384
      %14 = vsyncadd [#allocation4], %s13
      %s16 = sshll.u32 [#allocation3], 4
      %s17 = int_to_ptr.vmem [resolvable:$true] %s16
      %19 = dma.hbm_to_vmem [thread:$0]  %s0, 384, %s17, [#allocation4]
    $region5: #{tpu_custom_call.1} parent=1 // pred_fallthru
      _
    // Predicated region
    $region6: #{tpu_custom_call.1} parent=1 // pred_check
      _
    $region7: #{tpu_custom_call.1} parent=1 // pred_check_branch
      %21 = sbr.rel (0) target = $region9
    $region8: #{tpu_custom_call.1} parent=1 // pred_region
      _
    $region9: #{tpu_custom_call.1} parent=1 // pred_fallthru
      _
    // Predicated region
    $region10: #{tpu_custom_call.1} parent=1 // pred_check
      _
    $region11: #{tpu_custom_call.1} parent=1 // pred_check_branch
      %23 = sbr.rel (0) target = $region13
    $region12: #{tpu_custom_call.1} parent=1 // pred_region
      _
    $region13: #{tpu_custom_call.1} parent=1 // pred_fallthru
      _
    // Predicated region
    $region14: #{tpu_custom_call.1} parent=1 // pred_check
      _
    $region15: #{tpu_custom_call.1} parent=1 // pred_check_branch
      %25 = sbr.rel (0) target = $region17
    $region16: #{tpu_custom_call.1} parent=1 // pred_region
      %26 = dma.done [#allocation4], 384
    $region17: #{tpu_custom_call.1} parent=1 // pred_fallthru
      _
    %v27 = vld [vmem:[#allocation3] sm:$0xff]
    %v28 = vld [vmem:[#allocation3 + $0x8] sm:$0xff]
    %v29 = vld [vmem:[#allocation3 + $0x10] sm:$0xff]
    %v33 = vcombine.high %v27, %v27
    %v34 = vcombine.high %v28, %v28
    %v35 = vcombine.high %v29, %v29
    %39 = vst [vmem:[#allocation2] sm:$0xf] %v27
    %40 = vst [vmem:[#allocation2 + $0x8] sm:$0xf] %v33
    %41 = vst [vmem:[#allocation2 + $0x10] sm:$0xf] %v28
    %42 = vst [vmem:[#allocation2 + $0x18] sm:$0xf] %v34
    %43 = vst [vmem:[#allocation2 + $0x20] sm:$0xf] %v29
    %44 = vst [vmem:[#allocation2 + $0x28] sm:$0xf] %v35
    %45 = vrot.lane.b32.xlu0 %v27, 127
    %v46 = vpop.permute.xlu0 %45
    %47 = vrot.lane.b32.xlu0 %v33, 127
    %v48 = vpop.permute.xlu0 %47
    %49 = vrot.lane.b32.xlu0 %v28, 127
    %v50 = vpop.permute.xlu0 %49
    %51 = vrot.lane.b32.xlu0 %v34, 127
    %v52 = vpop.permute.xlu0 %51
    %53 = vrot.lane.b32.xlu0 %v29, 127
    %v54 = vpop.permute.xlu0 %53
    %55 = vrot.lane.b32.xlu0 %v35, 127
    %v56 = vpop.permute.xlu0 %55
    %v57 = vlaneseq
    %v58 = vand.u32 %v57, 127
    %vm59 = vcmp.lt.s32.totalorder %v58, 127
    %v60 = vsel %vm59, %v54, %v56
    %v61 = vsel %vm59, %v52, %v54
    %v62 = vsel %vm59, %v50, %v52
    %v63 = vsel %vm59, %v48, %v50
    %v64 = vsel %vm59, %v46, %v48
    %v65 = vsel %vm59, %v56, %v46
    %v72 = vrot.slane %v64, 4
    %v73 = vrot.slane %v63, 4
    %v74 = vrot.slane %v62, 4
    %v75 = vrot.slane %v61, 4
    %v76 = vrot.slane %v60, 4
    %v77 = vrot.slane %v65, 4
    %84 = vst [vmem:[#allocation2] sm:$0xf0] %v72
    %85 = vst [vmem:[#allocation2 + $0x8] sm:$0xf0] %v73
    %86 = vst [vmem:[#allocation2 + $0x10] sm:$0xf0] %v74
    %87 = vst [vmem:[#allocation2 + $0x18] sm:$0xf0] %v75
    %88 = vst [vmem:[#allocation2 + $0x20] sm:$0xf0] %v76
    %89 = vst [vmem:[#allocation2 + $0x28] sm:$0xf0] %v77
    %90 = vrot.lane.b32.xlu0 %v27, 126
    %v91 = vpop.permute.xlu0 %90
    %92 = vrot.lane.b32.xlu0 %v33, 126
    %v93 = vpop.permute.xlu0 %92
    %94 = vrot.lane.b32.xlu0 %v28, 126
    %v95 = vpop.permute.xlu0 %94
    %96 = vrot.lane.b32.xlu0 %v34, 126
    %v97 = vpop.permute.xlu0 %96
    %98 = vrot.lane.b32.xlu0 %v29, 126
    %v99 = vpop.permute.xlu0 %98
    %100 = vrot.lane.b32.xlu0 %v35, 126
    %v101 = vpop.permute.xlu0 %100
    %vm102 = vcmp.lt.s32.totalorder %v58, 126
    %v103 = vsel %vm102, %v99, %v101
    %v104 = vsel %vm102, %v97, %v99
    %v105 = vsel %vm102, %v95, %v97
    %v106 = vsel %vm102, %v93, %v95
    %v107 = vsel %vm102, %v91, %v93
    %v108 = vsel %vm102, %v101, %v91
    %109 = vst [vmem:[#allocation2 + $0x30] sm:$0xf] %v107
    %110 = vst [vmem:[#allocation2 + $0x38] sm:$0xf] %v106
    %111 = vst [vmem:[#allocation2 + $0x40] sm:$0xf] %v105
    %112 = vst [vmem:[#allocation2 + $0x48] sm:$0xf] %v104
    %113 = vst [vmem:[#allocation2 + $0x50] sm:$0xf] %v103
    %114 = vst [vmem:[#allocation2 + $0x58] sm:$0xf] %v108
    %115 = vrot.lane.b32.xlu0 %v27, 125
    %v116 = vpop.permute.xlu0 %115
    %117 = vrot.lane.b32.xlu0 %v33, 125
    %v118 = vpop.permute.xlu0 %117
    %119 = vrot.lane.b32.xlu0 %v28, 125
    %v120 = vpop.permute.xlu0 %119
    %121 = vrot.lane.b32.xlu0 %v34, 125
    %v122 = vpop.permute.xlu0 %121
    %123 = vrot.lane.b32.xlu0 %v29, 125
    %v124 = vpop.permute.xlu0 %123
    %125 = vrot.lane.b32.xlu0 %v35, 125
    %v126 = vpop.permute.xlu0 %125
    %vm127 = vcmp.lt.s32.totalorder %v58, 125
    %v128 = vsel %vm127, %v124, %v126
    %v129 = vsel %vm127, %v122, %v124
    %v130 = vsel %vm127, %v120, %v122
    %v131 = vsel %vm127, %v118, %v120
    %v132 = vsel %vm127, %v116, %v118
    %v133 = vsel %vm127, %v126, %v116
    %v140 = vrot.slane %v132, 4
    %v141 = vrot.slane %v131, 4
    %v142 = vrot.slane %v130, 4
    %v143 = vrot.slane %v129, 4
    %v144 = vrot.slane %v128, 4
    %v145 = vrot.slane %v133, 4
    %152 = vst [vmem:[#allocation2 + $0x30] sm:$0xf0] %v140
    %153 = vst [vmem:[#allocation2 + $0x38] sm:$0xf0] %v141
    %154 = vst [vmem:[#allocation2 + $0x40] sm:$0xf0] %v142
    %155 = vst [vmem:[#allocation2 + $0x48] sm:$0xf0] %v143
    %156 = vst [vmem:[#allocation2 + $0x50] sm:$0xf0] %v144
    %157 = vst [vmem:[#allocation2 + $0x58] sm:$0xf0] %v145
    %158 = vrot.lane.b32.xlu0 %v27, 110
    %v159 = vpop.permute.xlu0 %158
    %160 = vrot.lane.b32.xlu0 %v33, 110
    %v161 = vpop.permute.xlu0 %160
    %162 = vrot.lane.b32.xlu0 %v28, 110
    %v163 = vpop.permute.xlu0 %162
    %164 = vrot.lane.b32.xlu0 %v34, 110
    %v165 = vpop.permute.xlu0 %164
    %166 = vrot.lane.b32.xlu0 %v29, 110
    %v167 = vpop.permute.xlu0 %166
    %168 = vrot.lane.b32.xlu0 %v35, 110
    %v169 = vpop.permute.xlu0 %168
    %vm170 = vcmp.lt.s32.totalorder %v58, 110
    %v171 = vsel %vm170, %v167, %v169
    %v172 = vsel %vm170, %v165, %v167
    %v173 = vsel %vm170, %v163, %v165
    %v174 = vsel %vm170, %v161, %v163
    %v175 = vsel %vm170, %v159, %v161
    %v176 = vsel %vm170, %v169, %v159
    %177 = vst [vmem:[#allocation2 + $0x60] sm:$0xf] %v175
    %178 = vst [vmem:[#allocation2 + $0x68] sm:$0xf] %v174
    %179 = vst [vmem:[#allocation2 + $0x70] sm:$0xf] %v173
    %180 = vst [vmem:[#allocation2 + $0x78] sm:$0xf] %v172
    %181 = vst [vmem:[#allocation2 + $0x80] sm:$0xf] %v171
    %182 = vst [vmem:[#allocation2 + $0x88] sm:$0xf] %v176
    %183 = vrot.lane.b32.xlu0 %v27, 109
    %v184 = vpop.permute.xlu0 %183
    %185 = vrot.lane.b32.xlu0 %v33, 109
    %v186 = vpop.permute.xlu0 %185
    %187 = vrot.lane.b32.xlu0 %v28, 109
    %v188 = vpop.permute.xlu0 %187
    %189 = vrot.lane.b32.xlu0 %v34, 109
    %v190 = vpop.permute.xlu0 %189
    %191 = vrot.lane.b32.xlu0 %v29, 109
    %v192 = vpop.permute.xlu0 %191
    %193 = vrot.lane.b32.xlu0 %v35, 109
    %v194 = vpop.permute.xlu0 %193
    %vm195 = vcmp.lt.s32.totalorder %v58, 109
    %v196 = vsel %vm195, %v192, %v194
    %v197 = vsel %vm195, %v190, %v192
    %v198 = vsel %vm195, %v188, %v190
    %v199 = vsel %vm195, %v186, %v188
    %v200 = vsel %vm195, %v184, %v186
    %v201 = vsel %vm195, %v194, %v184
    %v208 = vrot.slane %v200, 4
    %v209 = vrot.slane %v199, 4
    %v210 = vrot.slane %v198, 4
    %v211 = vrot.slane %v197, 4
    %v212 = vrot.slane %v196, 4
    %v213 = vrot.slane %v201, 4
    %220 = vst [vmem:[#allocation2 + $0x60] sm:$0xf0] %v208
    %221 = vst [vmem:[#allocation2 + $0x68] sm:$0xf0] %v209
    %222 = vst [vmem:[#allocation2 + $0x70] sm:$0xf0] %v210
    %223 = vst [vmem:[#allocation2 + $0x78] sm:$0xf0] %v211
    %224 = vst [vmem:[#allocation2 + $0x80] sm:$0xf0] %v212
    %225 = vst [vmem:[#allocation2 + $0x88] sm:$0xf0] %v213
    %226 = vrot.lane.b32.xlu0 %v27, 108
    %v227 = vpop.permute.xlu0 %226
    %228 = vrot.lane.b32.xlu0 %v33, 108
    %v229 = vpop.permute.xlu0 %228
    %230 = vrot.lane.b32.xlu0 %v28, 108
    %v231 = vpop.permute.xlu0 %230
    %232 = vrot.lane.b32.xlu0 %v34, 108
    %v233 = vpop.permute.xlu0 %232
    %234 = vrot.lane.b32.xlu0 %v29, 108
    %v235 = vpop.permute.xlu0 %234
    %236 = vrot.lane.b32.xlu0 %v35, 108
    %v237 = vpop.permute.xlu0 %236
    %vm238 = vcmp.lt.s32.totalorder %v58, 108
    %v239 = vsel %vm238, %v235, %v237
    %v240 = vsel %vm238, %v233, %v235
    %v241 = vsel %vm238, %v231, %v233
    %v242 = vsel %vm238, %v229, %v231
    %v243 = vsel %vm238, %v227, %v229
    %v244 = vsel %vm238, %v237, %v227
    %245 = vst [vmem:[#allocation2 + $0x90] sm:$0xf] %v243
    %246 = vst [vmem:[#allocation2 + $0x98] sm:$0xf] %v242
    %247 = vst [vmem:[#allocation2 + $0xa0] sm:$0xf] %v241
    %248 = vst [vmem:[#allocation2 + $0xa8] sm:$0xf] %v240
    %249 = vst [vmem:[#allocation2 + $0xb0] sm:$0xf] %v239
    %250 = vst [vmem:[#allocation2 + $0xb8] sm:$0xf] %v244
    %251 = vrot.lane.b32.xlu0 %v27, 107
    %v252 = vpop.permute.xlu0 %251
    %253 = vrot.lane.b32.xlu0 %v33, 107
    %v254 = vpop.permute.xlu0 %253
    %255 = vrot.lane.b32.xlu0 %v28, 107
    %v256 = vpop.permute.xlu0 %255
    %257 = vrot.lane.b32.xlu0 %v34, 107
    %v258 = vpop.permute.xlu0 %257
    %259 = vrot.lane.b32.xlu0 %v29, 107
    %v260 = vpop.permute.xlu0 %259
    %261 = vrot.lane.b32.xlu0 %v35, 107
    %v262 = vpop.permute.xlu0 %261
    %vm263 = vcmp.lt.s32.totalorder %v58, 107
    %v264 = vsel %vm263, %v260, %v262
    %v265 = vsel %vm263, %v258, %v260
    %v266 = vsel %vm263, %v256, %v258
    %v267 = vsel %vm263, %v254, %v256
    %v268 = vsel %vm263, %v252, %v254
    %v269 = vsel %vm263, %v262, %v252
    %v276 = vrot.slane %v268, 4
    %v277 = vrot.slane %v267, 4
    %v278 = vrot.slane %v266, 4
    %v279 = vrot.slane %v265, 4
    %v280 = vrot.slane %v264, 4
    %v281 = vrot.slane %v269, 4
    %288 = vst [vmem:[#allocation2 + $0x90] sm:$0xf0] %v276
    %289 = vst [vmem:[#allocation2 + $0x98] sm:$0xf0] %v277
    %290 = vst [vmem:[#allocation2 + $0xa0] sm:$0xf0] %v278
    %291 = vst [vmem:[#allocation2 + $0xa8] sm:$0xf0] %v279
    %292 = vst [vmem:[#allocation2 + $0xb0] sm:$0xf0] %v280
    %293 = vst [vmem:[#allocation2 + $0xb8] sm:$0xf0] %v281
    %294 = vrot.lane.b32.xlu0 %v27, 92
    %v295 = vpop.permute.xlu0 %294
    %296 = vrot.lane.b32.xlu0 %v33, 92
    %v297 = vpop.permute.xlu0 %296
    %298 = vrot.lane.b32.xlu0 %v28, 92
    %v299 = vpop.permute.xlu0 %298
    %300 = vrot.lane.b32.xlu0 %v34, 92
    %v301 = vpop.permute.xlu0 %300
    %302 = vrot.lane.b32.xlu0 %v29, 92
    %v303 = vpop.permute.xlu0 %302
    %304 = vrot.lane.b32.xlu0 %v35, 92
    %v305 = vpop.permute.xlu0 %304
    %vm306 = vcmp.lt.s32.totalorder %v58, 92
    %v307 = vsel %vm306, %v303, %v305
    %v308 = vsel %vm306, %v301, %v303
    %v309 = vsel %vm306, %v299, %v301
    %v310 = vsel %vm306, %v297, %v299
    %v311 = vsel %vm306, %v295, %v297
    %v312 = vsel %vm306, %v305, %v295
    %313 = vst [vmem:[#allocation2 + $0xc0] sm:$0xf] %v311
    %314 = vst [vmem:[#allocation2 + $0xc8] sm:$0xf] %v310
    %315 = vst [vmem:[#allocation2 + $0xd0] sm:$0xf] %v309
    %316 = vst [vmem:[#allocation2 + $0xd8] sm:$0xf] %v308
    %317 = vst [vmem:[#allocation2 + $0xe0] sm:$0xf] %v307
    %318 = vst [vmem:[#allocation2 + $0xe8] sm:$0xf] %v312
    %319 = vrot.lane.b32.xlu0 %v27, 91
    %v320 = vpop.permute.xlu0 %319
    %321 = vrot.lane.b32.xlu0 %v33, 91
    %v322 = vpop.permute.xlu0 %321
    %323 = vrot.lane.b32.xlu0 %v28, 91
    %v324 = vpop.permute.xlu0 %323
    %325 = vrot.lane.b32.xlu0 %v34, 91
    %v326 = vpop.permute.xlu0 %325
    %327 = vrot.lane.b32.xlu0 %v29, 91
    %v328 = vpop.permute.xlu0 %327
    %329 = vrot.lane.b32.xlu0 %v35, 91
    %v330 = vpop.permute.xlu0 %329
    %vm331 = vcmp.lt.s32.totalorder %v58, 91
    %v332 = vsel %vm331, %v328, %v330
    %v333 = vsel %vm331, %v326, %v328
    %v334 = vsel %vm331, %v324, %v326
    %v335 = vsel %vm331, %v322, %v324
    %v336 = vsel %vm331, %v320, %v322
    %v337 = vsel %vm331, %v330, %v320
    %v344 = vrot.slane %v336, 4
    %v345 = vrot.slane %v335, 4
    %v346 = vrot.slane %v334, 4
    %v347 = vrot.slane %v333, 4
    %v348 = vrot.slane %v332, 4
    %v349 = vrot.slane %v337, 4
    %356 = vst [vmem:[#allocation2 + $0xc0] sm:$0xf0] %v344
    %357 = vst [vmem:[#allocation2 + $0xc8] sm:$0xf0] %v345
    %358 = vst [vmem:[#allocation2 + $0xd0] sm:$0xf0] %v346
    %359 = vst [vmem:[#allocation2 + $0xd8] sm:$0xf0] %v347
    %360 = vst [vmem:[#allocation2 + $0xe0] sm:$0xf0] %v348
    %361 = vst [vmem:[#allocation2 + $0xe8] sm:$0xf0] %v349
    %362 = vrot.lane.b32.xlu0 %v27, 90
    %v363 = vpop.permute.xlu0 %362
    %364 = vrot.lane.b32.xlu0 %v33, 90
    %v365 = vpop.permute.xlu0 %364
    %366 = vrot.lane.b32.xlu0 %v28, 90
    %v367 = vpop.permute.xlu0 %366
    %368 = vrot.lane.b32.xlu0 %v34, 90
    %v369 = vpop.permute.xlu0 %368
    %370 = vrot.lane.b32.xlu0 %v29, 90
    %v371 = vpop.permute.xlu0 %370
    %372 = vrot.lane.b32.xlu0 %v35, 90
    %v373 = vpop.permute.xlu0 %372
    %vm374 = vcmp.lt.s32.totalorder %v58, 90
    %v375 = vsel %vm374, %v371, %v373
    %v376 = vsel %vm374, %v369, %v371
    %v377 = vsel %vm374, %v367, %v369
    %v378 = vsel %vm374, %v365, %v367
    %v379 = vsel %vm374, %v363, %v365
    %v380 = vsel %vm374, %v373, %v363
    %381 = vst [vmem:[#allocation2 + $0xf0] sm:$0xf] %v379
    %382 = vst [vmem:[#allocation2 + $0xf8] sm:$0xf] %v378
    %383 = vst [vmem:[#allocation2 + $0x100] sm:$0xf] %v377
    %384 = vst [vmem:[#allocation2 + $0x108] sm:$0xf] %v376
    %385 = vst [vmem:[#allocation2 + $0x110] sm:$0xf] %v375
    %386 = vst [vmem:[#allocation2 + $0x118] sm:$0xf] %v380
    %387 = vrot.lane.b32.xlu0 %v27, 89
    %v388 = vpop.permute.xlu0 %387
    %389 = vrot.lane.b32.xlu0 %v33, 89
    %v390 = vpop.permute.xlu0 %389
    %391 = vrot.lane.b32.xlu0 %v28, 89
    %v392 = vpop.permute.xlu0 %391
    %393 = vrot.lane.b32.xlu0 %v34, 89
    %v394 = vpop.permute.xlu0 %393
    %395 = vrot.lane.b32.xlu0 %v29, 89
    %v396 = vpop.permute.xlu0 %395
    %397 = vrot.lane.b32.xlu0 %v35, 89
    %v398 = vpop.permute.xlu0 %397
    %vm399 = vcmp.lt.s32.totalorder %v58, 89
    %v400 = vsel %vm399, %v396, %v398
    %v401 = vsel %vm399, %v394, %v396
    %v402 = vsel %vm399, %v392, %v394
    %v403 = vsel %vm399, %v390, %v392
    %v404 = vsel %vm399, %v388, %v390
    %v405 = vsel %vm399, %v398, %v388
    %v412 = vrot.slane %v404, 4
    %v413 = vrot.slane %v403, 4
    %v414 = vrot.slane %v402, 4
    %v415 = vrot.slane %v401, 4
    %v416 = vrot.slane %v400, 4
    %v417 = vrot.slane %v405, 4
    %424 = vst [vmem:[#allocation2 + $0xf0] sm:$0xf0] %v412
    %425 = vst [vmem:[#allocation2 + $0xf8] sm:$0xf0] %v413
    %426 = vst [vmem:[#allocation2 + $0x100] sm:$0xf0] %v414
    %427 = vst [vmem:[#allocation2 + $0x108] sm:$0xf0] %v415
    %428 = vst [vmem:[#allocation2 + $0x110] sm:$0xf0] %v416
    %429 = vst [vmem:[#allocation2 + $0x118] sm:$0xf0] %v417
    %430 = vrot.lane.b32.xlu0 %v27, 74
    %v431 = vpop.permute.xlu0 %430
    %432 = vrot.lane.b32.xlu0 %v33, 74
    %v433 = vpop.permute.xlu0 %432
    %434 = vrot.lane.b32.xlu0 %v28, 74
    %v435 = vpop.permute.xlu0 %434
    %436 = vrot.lane.b32.xlu0 %v34, 74
    %v437 = vpop.permute.xlu0 %436
    %438 = vrot.lane.b32.xlu0 %v29, 74
    %v439 = vpop.permute.xlu0 %438
    %440 = vrot.lane.b32.xlu0 %v35, 74
    %v441 = vpop.permute.xlu0 %440
    %vm442 = vcmp.lt.s32.totalorder %v58, 74
    %v443 = vsel %vm442, %v439, %v441
    %v444 = vsel %vm442, %v437, %v439
    %v445 = vsel %vm442, %v435, %v437
    %v446 = vsel %vm442, %v433, %v435
    %v447 = vsel %vm442, %v431, %v433
    %v448 = vsel %vm442, %v441, %v431
    %449 = vst [vmem:[#allocation2 + $0x120] sm:$0xf] %v447
    %450 = vst [vmem:[#allocation2 + $0x128] sm:$0xf] %v446
    %451 = vst [vmem:[#allocation2 + $0x130] sm:$0xf] %v445
    %452 = vst [vmem:[#allocation2 + $0x138] sm:$0xf] %v444
    %453 = vst [vmem:[#allocation2 + $0x140] sm:$0xf] %v443
    %454 = vst [vmem:[#allocation2 + $0x148] sm:$0xf] %v448
    %455 = vrot.lane.b32.xlu0 %v27, 73
    %v456 = vpop.permute.xlu0 %455
    %457 = vrot.lane.b32.xlu0 %v33, 73
    %v458 = vpop.permute.xlu0 %457
    %459 = vrot.lane.b32.xlu0 %v28, 73
    %v460 = vpop.permute.xlu0 %459
    %461 = vrot.lane.b32.xlu0 %v34, 73
    %v462 = vpop.permute.xlu0 %461
    %463 = vrot.lane.b32.xlu0 %v29, 73
    %v464 = vpop.permute.xlu0 %463
    %465 = vrot.lane.b32.xlu0 %v35, 73
    %v466 = vpop.permute.xlu0 %465
    %vm467 = vcmp.lt.s32.totalorder %v58, 73
    %v468 = vsel %vm467, %v464, %v466
    %v469 = vsel %vm467, %v462, %v464
    %v470 = vsel %vm467, %v460, %v462
    %v471 = vsel %vm467, %v458, %v460
    %v472 = vsel %vm467, %v456, %v458
    %v473 = vsel %vm467, %v466, %v456
    %v480 = vrot.slane %v472, 4
    %v481 = vrot.slane %v471, 4
    %v482 = vrot.slane %v470, 4
    %v483 = vrot.slane %v469, 4
    %v484 = vrot.slane %v468, 4
    %v485 = vrot.slane %v473, 4
    %492 = vst [vmem:[#allocation2 + $0x120] sm:$0xf0] %v480
    %493 = vst [vmem:[#allocation2 + $0x128] sm:$0xf0] %v481
    %494 = vst [vmem:[#allocation2 + $0x130] sm:$0xf0] %v482
    %495 = vst [vmem:[#allocation2 + $0x138] sm:$0xf0] %v483
    %496 = vst [vmem:[#allocation2 + $0x140] sm:$0xf0] %v484
    %497 = vst [vmem:[#allocation2 + $0x148] sm:$0xf0] %v485
    %498 = vrot.lane.b32.xlu0 %v27, 72
    %v499 = vpop.permute.xlu0 %498
    %500 = vrot.lane.b32.xlu0 %v33, 72
    %v501 = vpop.permute.xlu0 %500
    %502 = vrot.lane.b32.xlu0 %v28, 72
    %v503 = vpop.permute.xlu0 %502
    %504 = vrot.lane.b32.xlu0 %v34, 72
    %v505 = vpop.permute.xlu0 %504
    %506 = vrot.lane.b32.xlu0 %v29, 72
    %v507 = vpop.permute.xlu0 %506
    %508 = vrot.lane.b32.xlu0 %v35, 72
    %v509 = vpop.permute.xlu0 %508
    %vm510 = vcmp.lt.s32.totalorder %v58, 72
    %v511 = vsel %vm510, %v507, %v509
    %v512 = vsel %vm510, %v505, %v507
    %v513 = vsel %vm510, %v503, %v505
    %v514 = vsel %vm510, %v501, %v503
    %v515 = vsel %vm510, %v499, %v501
    %v516 = vsel %vm510, %v509, %v499
    %517 = vst [vmem:[#allocation2 + $0x150] sm:$0xf] %v515
    %518 = vst [vmem:[#allocation2 + $0x158] sm:$0xf] %v514
    %519 = vst [vmem:[#allocation2 + $0x160] sm:$0xf] %v513
    %520 = vst [vmem:[#allocation2 + $0x168] sm:$0xf] %v512
    %521 = vst [vmem:[#allocation2 + $0x170] sm:$0xf] %v511
    %522 = vst [vmem:[#allocation2 + $0x178] sm:$0xf] %v516
    %523 = vrot.lane.b32.xlu0 %v27, 71
    %v524 = vpop.permute.xlu0 %523
    %525 = vrot.lane.b32.xlu0 %v33, 71
    %v526 = vpop.permute.xlu0 %525
    %527 = vrot.lane.b32.xlu0 %v28, 71
    %v528 = vpop.permute.xlu0 %527
    %529 = vrot.lane.b32.xlu0 %v34, 71
    %v530 = vpop.permute.xlu0 %529
    %531 = vrot.lane.b32.xlu0 %v29, 71
    %v532 = vpop.permute.xlu0 %531
    %533 = vrot.lane.b32.xlu0 %v35, 71
    %v534 = vpop.permute.xlu0 %533
    %vm535 = vcmp.lt.s32.totalorder %v58, 71
    %v536 = vsel %vm535, %v532, %v534
    %v537 = vsel %vm535, %v530, %v532
    %v538 = vsel %vm535, %v528, %v530
    %v539 = vsel %vm535, %v526, %v528
    %v540 = vsel %vm535, %v524, %v526
    %v541 = vsel %vm535, %v534, %v524
    %v548 = vrot.slane %v540, 4
    %v549 = vrot.slane %v539, 4
    %v550 = vrot.slane %v538, 4
    %v551 = vrot.slane %v537, 4
    %v552 = vrot.slane %v536, 4
    %v553 = vrot.slane %v541, 4
    %560 = vst [vmem:[#allocation2 + $0x150] sm:$0xf0] %v548
    %561 = vst [vmem:[#allocation2 + $0x158] sm:$0xf0] %v549
    %562 = vst [vmem:[#allocation2 + $0x160] sm:$0xf0] %v550
    %563 = vst [vmem:[#allocation2 + $0x168] sm:$0xf0] %v551
    %564 = vst [vmem:[#allocation2 + $0x170] sm:$0xf0] %v552
    %565 = vst [vmem:[#allocation2 + $0x178] sm:$0xf0] %v553
    %v566 = vld [vmem:[%s1] sm:$0xff]
    %v567 = vld [vmem:[#allocation2] sm:$0xff]
    %v568 = vld [vmem:[#allocation2 + $0x8] sm:$0xff]
    %v569 = vld [vmem:[#allocation2 + $0x10] sm:$0xff]
    %v570 = vld [vmem:[#allocation2 + $0x18] sm:$0xff]
    %v571 = vld [vmem:[#allocation2 + $0x20] sm:$0xff]
    %v572 = vld [vmem:[#allocation2 + $0x28] sm:$0xff]
    %v573 = vld [vmem:[#allocation2 + $0x30] sm:$0xff]
    %v574 = vld [vmem:[#allocation2 + $0x38] sm:$0xff]
    %v575 = vld [vmem:[#allocation2 + $0x40] sm:$0xff]
    %v576 = vld [vmem:[#allocation2 + $0x48] sm:$0xff]
    %v577 = vld [vmem:[#allocation2 + $0x50] sm:$0xff]
    %v578 = vld [vmem:[#allocation2 + $0x58] sm:$0xff]
    %v579 = vld [vmem:[#allocation2 + $0x60] sm:$0xff]
    %v580 = vld [vmem:[#allocation2 + $0x68] sm:$0xff]
    %v581 = vld [vmem:[#allocation2 + $0x70] sm:$0xff]
    %v582 = vld [vmem:[#allocation2 + $0x78] sm:$0xff]
    %v583 = vld [vmem:[#allocation2 + $0x80] sm:$0xff]
    %v584 = vld [vmem:[#allocation2 + $0x88] sm:$0xff]
    %v585 = vld [vmem:[#allocation2 + $0x90] sm:$0xff]
    %v586 = vld [vmem:[#allocation2 + $0x98] sm:$0xff]
    %v587 = vld [vmem:[#allocation2 + $0xa0] sm:$0xff]
    %v588 = vld [vmem:[#allocation2 + $0xa8] sm:$0xff]
    %v589 = vld [vmem:[#allocation2 + $0xb0] sm:$0xff]
    %v590 = vld [vmem:[#allocation2 + $0xb8] sm:$0xff]
    %v591 = vld [vmem:[#allocation2 + $0xc0] sm:$0xff]
    %v592 = vld [vmem:[#allocation2 + $0xc8] sm:$0xff]
    %v593 = vld [vmem:[#allocation2 + $0xd0] sm:$0xff]
    %v594 = vld [vmem:[#allocation2 + $0xd8] sm:$0xff]
    %v595 = vld [vmem:[#allocation2 + $0xe0] sm:$0xff]
    %v596 = vld [vmem:[#allocation2 + $0xe8] sm:$0xff]
    %v597 = vld [vmem:[#allocation2 + $0xf0] sm:$0xff]
    %v598 = vld [vmem:[#allocation2 + $0xf8] sm:$0xff]
    %v599 = vld [vmem:[#allocation2 + $0x100] sm:$0xff]
    %v600 = vld [vmem:[#allocation2 + $0x108] sm:$0xff]
    %v601 = vld [vmem:[#allocation2 + $0x110] sm:$0xff]
    %v602 = vld [vmem:[#allocation2 + $0x118] sm:$0xff]
    %v603 = vld [vmem:[#allocation2 + $0x120] sm:$0xff]
    %v604 = vld [vmem:[#allocation2 + $0x128] sm:$0xff]
    %v605 = vld [vmem:[#allocation2 + $0x130] sm:$0xff]
    %v606 = vld [vmem:[#allocation2 + $0x138] sm:$0xff]
    %v607 = vld [vmem:[#allocation2 + $0x140] sm:$0xff]
    %v608 = vld [vmem:[#allocation2 + $0x148] sm:$0xff]
    %v609 = vld [vmem:[#allocation2 + $0x150] sm:$0xff]
    %v610 = vld [vmem:[#allocation2 + $0x158] sm:$0xff]
    %v611 = vld [vmem:[#allocation2 + $0x160] sm:$0xff]
    %v612 = vld [vmem:[#allocation2 + $0x168] sm:$0xff]
    %v613 = vld [vmem:[#allocation2 + $0x170] sm:$0xff]
    %v614 = vld [vmem:[#allocation2 + $0x178] sm:$0xff]
    %v615 = vld [vmem:[%s2] sm:$0xff]
    %617 = vset.pattern.permute.xlu0 0
    %618 = vperm.xlu0 %617, %v615
    %v619 = vpop.permute.xlu0 %618
    %vm621 = vcmask 523264
    %v623 = vsel %vm621, %v566, 0
    %v625 = vand.u32 %v568, 4294901760
    %626 = vmatprep.subr.mxu0 %v625
    %v627 = vand.u32 %v567, 4294901760
    %628 = vmatpush1.msra.mxu0 %v627
    %v629 = vand.u32 %v574, 4294901760
    %630 = vmatprep.subr.mxu0 %v629
    %v631 = vand.u32 %v573, 4294901760
    %632 = vmatpush1.msra.mxu0 %v631
    %v633 = vand.u32 %v580, 4294901760
    %634 = vmatprep.subr.mxu0 %v633
    %v635 = vand.u32 %v579, 4294901760
    %636 = vmatpush1.msra.mxu0 %v635
    %v637 = vand.u32 %v586, 4294901760
    %638 = vmatprep.subr.mxu0 %v637
    %v639 = vand.u32 %v585, 4294901760
    %640 = vmatpush1.msra.mxu0 %v639
    %v641 = vand.u32 %v592, 4294901760
    %642 = vmatprep.subr.mxu0 %v641
    %v643 = vand.u32 %v591, 4294901760
    %644 = vmatpush1.msra.mxu0 %v643
    %v645 = vand.u32 %v598, 4294901760
    %646 = vmatprep.subr.mxu0 %v645
    %v647 = vand.u32 %v597, 4294901760
    %648 = vmatpush1.msra.mxu0 %v647
    %v649 = vand.u32 %v604, 4294901760
    %650 = vmatprep.subr.mxu0 %v649
    %v651 = vand.u32 %v603, 4294901760
    %652 = vmatpush1.msra.mxu0 %v651
    %v653 = vand.u32 %v610, 4294901760
    %654 = vmatprep.subr.mxu0 %v653
    %v655 = vand.u32 %v609, 4294901760
    %656 = vmatpush1.msra.mxu0 %v655
    %657 = vmatprep.subr.mxu0 0.0
    %658 = vmatpush1.msra.mxu0 0.0
    %659 = vmatprep.subr.mxu0 0.0
    %660 = vmatpush1.msra.mxu0 0.0
    %661 = vmatprep.subr.mxu0 0.0
    %662 = vmatpush1.msra.mxu0 0.0
    %663 = vmatprep.subr.mxu0 0.0
    %664 = vmatpush1.msra.mxu0 0.0
    %665 = vmatprep.subr.mxu0 0.0
    %666 = vmatpush1.msra.mxu0 0.0
    %667 = vmatprep.subr.mxu0 0.0
    %668 = vmatpush1.msra.mxu0 0.0
    %669 = vmatprep.subr.mxu0 0.0
    %670 = vmatpush1.msra.mxu0 0.0
    %671 = vmatprep.subr.mxu0 0.0
    %672 = vmatpush1.msra.mxu0 0.0
    %673 = vmatprep.subr.mxu0 0.0
    %674 = vmatpush1.msra.mxu0 0.0
    %675 = vmatprep.subr.mxu0 0.0
    %676 = vmatpush1.msra.mxu0 0.0
    %677 = vmatprep.subr.mxu0 0.0
    %678 = vmatpush1.msra.mxu0 0.0
    %679 = vmatprep.subr.mxu0 0.0
    %680 = vmatpush1.msra.mxu0 0.0
    %681 = vmatprep.subr.mxu0 0.0
    %682 = vmatpush1.msra.mxu0 0.0
    %683 = vmatprep.subr.mxu0 0.0
    %684 = vmatpush1.msra.mxu0 0.0
    %685 = vmatprep.subr.mxu0 0.0
    %686 = vmatpush1.msra.mxu0 0.0
    %687 = vmatprep.subr.mxu0 0.0
    %688 = vmatpush1.msra.mxu0 0.0
    %689 = vmatprep.subr.mxu0 0.0
    %690 = vmatpush1.msra.mxu0 0.0
    %691 = vmatprep.subr.mxu0 0.0
    %692 = vmatpush1.msra.mxu0 0.0
    %693 = vmatprep.subr.mxu0 0.0
    %694 = vmatpush1.msra.mxu0 0.0
    %695 = vmatprep.subr.mxu0 0.0
    %696 = vmatpush1.msra.mxu0 0.0
    %697 = vmatprep.subr.mxu0 0.0
    %698 = vmatpush1.msra.mxu0 0.0
    %699 = vmatprep.subr.mxu0 0.0
    %700 = vmatpush1.msra.mxu0 0.0
    %701 = vmatprep.subr.mxu0 0.0
    %702 = vmatpush1.msra.mxu0 0.0
    %703 = vmatprep.subr.mxu0 0.0
    %704 = vmatpush1.msra.mxu0 0.0
    %705 = vmatprep.mubr.f32.mxu0 0.0
    %v706 = vand.u32 %v623, 4294901760
    %v707 = vsub.f32 %v623, %v706
    %v708 = vand.u32 %v707, 4294901760
    %v709 = vsub.f32 %v707, %v708
    %v710 = vand.u32 %v709, 4294901760
    %711 = vmatmul.mubr.f32.gmra.mrb[0].mxu0 %v710
    %v712 = vpop.f32.mrb[0].mxu0
    %v713 = vadd.f32 %v619, %v712
    %v714 = vpop.f32.mrb[0].mxu0
    %v715 = vadd.f32 %v619, %v714
    %716 = vdwg.mxu0
    %v717 = vand.u32 %v568, 4294901760
    %v718 = vsub.f32 %v568, %v717
    %v719 = vand.u32 %v718, 4294901760
    %v720 = vsub.f32 %v718, %v719
    %v721 = vand.u32 %v720, 4294901760
    %722 = vmatprep.subr.mxu0 %v721
    %v723 = vand.u32 %v567, 4294901760
    %v724 = vsub.f32 %v567, %v723
    %v725 = vand.u32 %v724, 4294901760
    %v726 = vsub.f32 %v724, %v725
    %v727 = vand.u32 %v726, 4294901760
    %728 = vmatpush1.msra.mxu0 %v727
    %v729 = vand.u32 %v574, 4294901760
    %v730 = vsub.f32 %v574, %v729
    %v731 = vand.u32 %v730, 4294901760
    %v732 = vsub.f32 %v730, %v731
    %v733 = vand.u32 %v732, 4294901760
    %734 = vmatprep.subr.mxu0 %v733
    %v735 = vand.u32 %v573, 4294901760
    %v736 = vsub.f32 %v573, %v735
    %v737 = vand.u32 %v736, 4294901760
    %v738 = vsub.f32 %v736, %v737
    %v739 = vand.u32 %v738, 4294901760
    %740 = vmatpush1.msra.mxu0 %v739
    %v741 = vand.u32 %v580, 4294901760
    %v742 = vsub.f32 %v580, %v741
    %v743 = vand.u32 %v742, 4294901760
    %v744 = vsub.f32 %v742, %v743
    %v745 = vand.u32 %v744, 4294901760
    %746 = vmatprep.subr.mxu0 %v745
    %v747 = vand.u32 %v579, 4294901760
    %v748 = vsub.f32 %v579, %v747
    %v749 = vand.u32 %v748, 4294901760
    %v750 = vsub.f32 %v748, %v749
    %v751 = vand.u32 %v750, 4294901760
    %752 = vmatpush1.msra.mxu0 %v751
    %v753 = vand.u32 %v586, 4294901760
    %v754 = vsub.f32 %v586, %v753
    %v755 = vand.u32 %v754, 4294901760
    %v756 = vsub.f32 %v754, %v755
    %v757 = vand.u32 %v756, 4294901760
    %758 = vmatprep.subr.mxu0 %v757
    %v759 = vand.u32 %v585, 4294901760
    %v760 = vsub.f32 %v585, %v759
    %v761 = vand.u32 %v760, 4294901760
    %v762 = vsub.f32 %v760, %v761
    %v763 = vand.u32 %v762, 4294901760
    %764 = vmatpush1.msra.mxu0 %v763
    %v765 = vand.u32 %v592, 4294901760
    %v766 = vsub.f32 %v592, %v765
    %v767 = vand.u32 %v766, 4294901760
    %v768 = vsub.f32 %v766, %v767
    %v769 = vand.u32 %v768, 4294901760
    %770 = vmatprep.subr.mxu0 %v769
    %v771 = vand.u32 %v591, 4294901760
    %v772 = vsub.f32 %v591, %v771
    %v773 = vand.u32 %v772, 4294901760
    %v774 = vsub.f32 %v772, %v773
    %v775 = vand.u32 %v774, 4294901760
    %776 = vmatpush1.msra.mxu0 %v775
    %v777 = vand.u32 %v598, 4294901760
    %v778 = vsub.f32 %v598, %v777
    %v779 = vand.u32 %v778, 4294901760
    %v780 = vsub.f32 %v778, %v779
    %v781 = vand.u32 %v780, 4294901760
    %782 = vmatprep.subr.mxu0 %v781
    %v783 = vand.u32 %v597, 4294901760
    %v784 = vsub.f32 %v597, %v783
    %v785 = vand.u32 %v784, 4294901760
    %v786 = vsub.f32 %v784, %v785
    %v787 = vand.u32 %v786, 4294901760
    %788 = vmatpush1.msra.mxu0 %v787
    %v789 = vand.u32 %v604, 4294901760
    %v790 = vsub.f32 %v604, %v789
    %v791 = vand.u32 %v790, 4294901760
    %v792 = vsub.f32 %v790, %v791
    %v793 = vand.u32 %v792, 4294901760
    %794 = vmatprep.subr.mxu0 %v793
    %v795 = vand.u32 %v603, 4294901760
    %v796 = vsub.f32 %v603, %v795
    %v797 = vand.u32 %v796, 4294901760
    %v798 = vsub.f32 %v796, %v797
    %v799 = vand.u32 %v798, 4294901760
    %800 = vmatpush1.msra.mxu0 %v799
    %v801 = vand.u32 %v610, 4294901760
    %v802 = vsub.f32 %v610, %v801
    %v803 = vand.u32 %v802, 4294901760
    %v804 = vsub.f32 %v802, %v803
    %v805 = vand.u32 %v804, 4294901760
    %806 = vmatprep.subr.mxu0 %v805
    %v807 = vand.u32 %v609, 4294901760
    %v808 = vsub.f32 %v609, %v807
    %v809 = vand.u32 %v808, 4294901760
    %v810 = vsub.f32 %v808, %v809
    %v811 = vand.u32 %v810, 4294901760
    %812 = vmatpush1.msra.mxu0 %v811
    %813 = vmatprep.subr.mxu0 0.0
    %814 = vmatpush1.msra.mxu0 0.0
    %815 = vmatprep.subr.mxu0 0.0
    %816 = vmatpush1.msra.mxu0 0.0
    %817 = vmatprep.subr.mxu0 0.0
    %818 = vmatpush1.msra.mxu0 0.0
    %819 = vmatprep.subr.mxu0 0.0
    %820 = vmatpush1.msra.mxu0 0.0
    %821 = vmatprep.subr.mxu0 0.0
    %822 = vmatpush1.msra.mxu0 0.0
    %823 = vmatprep.subr.mxu0 0.0
    %824 = vmatpush1.msra.mxu0 0.0
    %825 = vmatprep.subr.mxu0 0.0
    %826 = vmatpush1.msra.mxu0 0.0
    %827 = vmatprep.subr.mxu0 0.0
    %828 = vmatpush1.msra.mxu0 0.0
    %829 = vmatprep.subr.mxu0 0.0
    %830 = vmatpush1.msra.mxu0 0.0
    %831 = vmatprep.subr.mxu0 0.0
    %832 = vmatpush1.msra.mxu0 0.0
    %833 = vmatprep.subr.mxu0 0.0
    %834 = vmatpush1.msra.mxu0 0.0
    %835 = vmatprep.subr.mxu0 0.0
    %836 = vmatpush1.msra.mxu0 0.0
    %837 = vmatprep.subr.mxu0 0.0
    %838 = vmatpush1.msra.mxu0 0.0
    %839 = vmatprep.subr.mxu0 0.0
    %840 = vmatpush1.msra.mxu0 0.0
    %841 = vmatprep.subr.mxu0 0.0
    %842 = vmatpush1.msra.mxu0 0.0
    %843 = vmatprep.subr.mxu0 0.0
    %844 = vmatpush1.msra.mxu0 0.0
    %845 = vmatprep.subr.mxu0 0.0
    %846 = vmatpush1.msra.mxu0 0.0
    %847 = vmatprep.subr.mxu0 0.0
    %848 = vmatpush1.msra.mxu0 0.0
    %849 = vmatprep.subr.mxu0 0.0
    %850 = vmatpush1.msra.mxu0 0.0
    %851 = vmatprep.subr.mxu0 0.0
    %852 = vmatpush1.msra.mxu0 0.0
    %853 = vmatprep.subr.mxu0 0.0
    %854 = vmatpush1.msra.mxu0 0.0
    %855 = vmatprep.subr.mxu0 0.0
    %856 = vmatpush1.msra.mxu0 0.0
    %857 = vmatprep.subr.mxu0 0.0
    %858 = vmatpush1.msra.mxu0 0.0
    %859 = vmatprep.subr.mxu0 0.0
    %860 = vmatpush1.msra.mxu0 0.0
    %861 = vmatprep.mubr.f32.mxu0 0.0
    %v862 = vand.u32 %v623, 4294901760
    %863 = vmatmul.mubr.f32.gmra.mrb[0].mxu0 %v862
    %v864 = vpop.f32.mrb[0].mxu0
    %v865 = vadd.f32 %v713, %v864
    %v866 = vpop.f32.mrb[0].mxu0
    %v867 = vadd.f32 %v715, %v866
    %868 = vdwg.mxu0
    %v869 = vand.u32 %v568, 4294901760
    %v870 = vsub.f32 %v568, %v869
    %871 = vmatprep.subr.mxu0 %v870
    %v872 = vand.u32 %v567, 4294901760
    %v873 = vsub.f32 %v567, %v872
    %874 = vmatpush1.msra.mxu0 %v873
    %v875 = vand.u32 %v574, 4294901760
    %v876 = vsub.f32 %v574, %v875
    %877 = vmatprep.subr.mxu0 %v876
    %v878 = vand.u32 %v573, 4294901760
    %v879 = vsub.f32 %v573, %v878
    %880 = vmatpush1.msra.mxu0 %v879
    %v881 = vand.u32 %v580, 4294901760
    %v882 = vsub.f32 %v580, %v881
    %883 = vmatprep.subr.mxu0 %v882
    %v884 = vand.u32 %v579, 4294901760
    %v885 = vsub.f32 %v579, %v884
    %886 = vmatpush1.msra.mxu0 %v885
    %v887 = vand.u32 %v586, 4294901760
    %v888 = vsub.f32 %v586, %v887
    %889 = vmatprep.subr.mxu0 %v888
    %v890 = vand.u32 %v585, 4294901760
    %v891 = vsub.f32 %v585, %v890
    %892 = vmatpush1.msra.mxu0 %v891
    %v893 = vand.u32 %v592, 4294901760
    %v894 = vsub.f32 %v592, %v893
    %895 = vmatprep.subr.mxu0 %v894
    %v896 = vand.u32 %v591, 4294901760
    %v897 = vsub.f32 %v591, %v896
    %898 = vmatpush1.msra.mxu0 %v897
    %v899 = vand.u32 %v598, 4294901760
    %v900 = vsub.f32 %v598, %v899
    %901 = vmatprep.subr.mxu0 %v900
    %v902 = vand.u32 %v597, 4294901760
    %v903 = vsub.f32 %v597, %v902
    %904 = vmatpush1.msra.mxu0 %v903
    %v905 = vand.u32 %v604, 4294901760
    %v906 = vsub.f32 %v604, %v905
    %907 = vmatprep.subr.mxu0 %v906
    %v908 = vand.u32 %v603, 4294901760
    %v909 = vsub.f32 %v603, %v908
    %910 = vmatpush1.msra.mxu0 %v909
    %v911 = vand.u32 %v610, 4294901760
    %v912 = vsub.f32 %v610, %v911
    %913 = vmatprep.subr.mxu0 %v912
    %v914 = vand.u32 %v609, 4294901760
    %v915 = vsub.f32 %v609, %v914
    %916 = vmatpush1.msra.mxu0 %v915
    %917 = vmatprep.subr.mxu0 0.0
    %918 = vmatpush1.msra.mxu0 0.0
    %919 = vmatprep.subr.mxu0 0.0
    %920 = vmatpush1.msra.mxu0 0.0
    %921 = vmatprep.subr.mxu0 0.0
    %922 = vmatpush1.msra.mxu0 0.0
    %923 = vmatprep.subr.mxu0 0.0
    %924 = vmatpush1.msra.mxu0 0.0
    %925 = vmatprep.subr.mxu0 0.0
    %926 = vmatpush1.msra.mxu0 0.0
    %927 = vmatprep.subr.mxu0 0.0
    %928 = vmatpush1.msra.mxu0 0.0
    %929 = vmatprep.subr.mxu0 0.0
    %930 = vmatpush1.msra.mxu0 0.0
    %931 = vmatprep.subr.mxu0 0.0
    %932 = vmatpush1.msra.mxu0 0.0
    %933 = vmatprep.subr.mxu0 0.0
    %934 = vmatpush1.msra.mxu0 0.0
    %935 = vmatprep.subr.mxu0 0.0
    %936 = vmatpush1.msra.mxu0 0.0
    %937 = vmatprep.subr.mxu0 0.0
    %938 = vmatpush1.msra.mxu0 0.0
    %939 = vmatprep.subr.mxu0 0.0
    %940 = vmatpush1.msra.mxu0 0.0
    %941 = vmatprep.subr.mxu0 0.0
    %942 = vmatpush1.msra.mxu0 0.0
    %943 = vmatprep.subr.mxu0 0.0
    %944 = vmatpush1.msra.mxu0 0.0
    %945 = vmatprep.subr.mxu0 0.0
    %946 = vmatpush1.msra.mxu0 0.0
    %947 = vmatprep.subr.mxu0 0.0
    %948 = vmatpush1.msra.mxu0 0.0
    %949 = vmatprep.subr.mxu0 0.0
    %950 = vmatpush1.msra.mxu0 0.0
    %951 = vmatprep.subr.mxu0 0.0
    %952 = vmatpush1.msra.mxu0 0.0
    %953 = vmatprep.subr.mxu0 0.0
    %954 = vmatpush1.msra.mxu0 0.0
    %955 = vmatprep.subr.mxu0 0.0
    %956 = vmatpush1.msra.mxu0 0.0
    %957 = vmatprep.subr.mxu0 0.0
    %958 = vmatpush1.msra.mxu0 0.0
    %959 = vmatprep.subr.mxu0 0.0
    %960 = vmatpush1.msra.mxu0 0.0
    %961 = vmatprep.subr.mxu0 0.0
    %962 = vmatpush1.msra.mxu0 0.0
    %963 = vmatprep.subr.mxu0 0.0
    %964 = vmatpush1.msra.mxu0 0.0
    %965 = vmatprep.mubr.f32.mxu0 0.0
    %v966 = vand.u32 %v623, 4294901760
    %v967 = vsub.f32 %v623, %v966
    %968 = vmatmul.mubr.f32.gmra.mrb[0].mxu0 %v967
    %v969 = vpop.f32.mrb[0].mxu0
    %v970 = vadd.f32 %v865, %v969
    %v971 = vpop.f32.mrb[0].mxu0
    %v972 = vadd.f32 %v867, %v971
    %973 = vdwg.mxu0
    %v974 = vand.u32 %v568, 4294901760
    %975 = vmatprep.subr.mxu0 %v974
    %v976 = vand.u32 %v567, 4294901760
    %977 = vmatpush1.msra.mxu0 %v976
    %v978 = vand.u32 %v574, 4294901760
    %979 = vmatprep.subr.mxu0 %v978
    %v980 = vand.u32 %v573, 4294901760
    %981 = vmatpush1.msra.mxu0 %v980
    %v982 = vand.u32 %v580, 4294901760
    %983 = vmatprep.subr.mxu0 %v982
    %v984 = vand.u32 %v579, 4294901760
    %985 = vmatpush1.msra.mxu0 %v984
    %v986 = vand.u32 %v586, 4294901760
    %987 = vmatprep.subr.mxu0 %v986
    %v988 = vand.u32 %v585, 4294901760
    %989 = vmatpush1.msra.mxu0 %v988
    %v990 = vand.u32 %v592, 4294901760
    %991 = vmatprep.subr.mxu0 %v990
    %v992 = vand.u32 %v591, 4294901760
    %993 = vmatpush1.msra.mxu0 %v992
    %v994 = vand.u32 %v598, 4294901760
    %995 = vmatprep.subr.mxu0 %v994
    %v996 = vand.u32 %v597, 4294901760
    %997 = vmatpush1.msra.mxu0 %v996
    %v998 = vand.u32 %v604, 4294901760
    %999 = vmatprep.subr.mxu0 %v998
    %v1000 = vand.u32 %v603, 4294901760
    %1001 = vmatpush1.msra.mxu0 %v1000
    %v1002 = vand.u32 %v610, 4294901760
    %1003 = vmatprep.subr.mxu0 %v1002
    %v1004 = vand.u32 %v609, 4294901760
    %1005 = vmatpush1.msra.mxu0 %v1004
    %1006 = vmatprep.subr.mxu0 0.0
    %1007 = vmatpush1.msra.mxu0 0.0
    %1008 = vmatprep.subr.mxu0 0.0
    %1009 = vmatpush1.msra.mxu0 0.0
    %1010 = vmatprep.subr.mxu0 0.0
    %1011 = vmatpush1.msra.mxu0 0.0
    %1012 = vmatprep.subr.mxu0 0.0
    %1013 = vmatpush1.msra.mxu0 0.0
    %1014 = vmatprep.subr.mxu0 0.0
    %1015 = vmatpush1.msra.mxu0 0.0
    %1016 = vmatprep.subr.mxu0 0.0
    %1017 = vmatpush1.msra.mxu0 0.0
    %1018 = vmatprep.subr.mxu0 0.0
    %1019 = vmatpush1.msra.mxu0 0.0
    %1020 = vmatprep.subr.mxu0 0.0
    %1021 = vmatpush1.msra.mxu0 0.0
    %1022 = vmatprep.subr.mxu0 0.0
    %1023 = vmatpush1.msra.mxu0 0.0
    %1024 = vmatprep.subr.mxu0 0.0
    %1025 = vmatpush1.msra.mxu0 0.0
    %1026 = vmatprep.subr.mxu0 0.0
    %1027 = vmatpush1.msra.mxu0 0.0
    %1028 = vmatprep.subr.mxu0 0.0
    %1029 = vmatpush1.msra.mxu0 0.0
    %1030 = vmatprep.subr.mxu0 0.0
    %1031 = vmatpush1.msra.mxu0 0.0
    %1032 = vmatprep.subr.mxu0 0.0
    %1033 = vmatpush1.msra.mxu0 0.0
    %1034 = vmatprep.subr.mxu0 0.0
    %1035 = vmatpush1.msra.mxu0 0.0
    %1036 = vmatprep.subr.mxu0 0.0
    %1037 = vmatpush1.msra.mxu0 0.0
    %1038 = vmatprep.subr.mxu0 0.0
    %1039 = vmatpush1.msra.mxu0 0.0
    %1040 = vmatprep.subr.mxu0 0.0
    %1041 = vmatpush1.msra.mxu0 0.0
    %1042 = vmatprep.subr.mxu0 0.0
    %1043 = vmatpush1.msra.mxu0 0.0
    %1044 = vmatprep.subr.mxu0 0.0
    %1045 = vmatpush1.msra.mxu0 0.0
    %1046 = vmatprep.subr.mxu0 0.0
    %1047 = vmatpush1.msra.mxu0 0.0
    %1048 = vmatprep.subr.mxu0 0.0
    %1049 = vmatpush1.msra.mxu0 0.0
    %1050 = vmatprep.subr.mxu0 0.0
    %1051 = vmatpush1.msra.mxu0 0.0
    %1052 = vmatprep.subr.mxu0 0.0
    %1053 = vmatpush1.msra.mxu0 0.0
    %1054 = vmatprep.mubr.f32.mxu0 0.0
    %v1055 = vand.u32 %v623, 4294901760
    %v1056 = vsub.f32 %v623, %v1055
    %v1057 = vand.u32 %v1056, 4294901760
    %1058 = vmatmul.mubr.f32.gmra.mrb[0].mxu0 %v1057
    %v1059 = vpop.f32.mrb[0].mxu0
    %v1060 = vadd.f32 %v970, %v1059
    %v1061 = vpop.f32.mrb[0].mxu0
    %v1062 = vadd.f32 %v972, %v1061
    %1063 = vdwg.mxu0
    %v1064 = vand.u32 %v568, 4294901760
    %v1065 = vsub.f32 %v568, %v1064
    %v1066 = vand.u32 %v1065, 4294901760
    %1067 = vmatprep.subr.mxu0 %v1066
    %v1068 = vand.u32 %v567, 4294901760
    %v1069 = vsub.f32 %v567, %v1068
    %v1070 = vand.u32 %v1069, 4294901760
    %1071 = vmatpush1.msra.mxu0 %v1070
    %v1072 = vand.u32 %v574, 4294901760
    %v1073 = vsub.f32 %v574, %v1072
    %v1074 = vand.u32 %v1073, 4294901760
    %1075 = vmatprep.subr.mxu0 %v1074
    %v1076 = vand.u32 %v573, 4294901760
    %v1077 = vsub.f32 %v573, %v1076
    %v1078 = vand.u32 %v1077, 4294901760
    %1079 = vmatpush1.msra.mxu0 %v1078
    %v1080 = vand.u32 %v580, 4294901760
    %v1081 = vsub.f32 %v580, %v1080
    %v1082 = vand.u32 %v1081, 4294901760
    %1083 = vmatprep.subr.mxu0 %v1082
    %v1084 = vand.u32 %v579, 4294901760
    %v1085 = vsub.f32 %v579, %v1084
    %v1086 = vand.u32 %v1085, 4294901760
    %1087 = vmatpush1.msra.mxu0 %v1086
    %v1088 = vand.u32 %v586, 4294901760
    %v1089 = vsub.f32 %v586, %v1088
    %v1090 = vand.u32 %v1089, 4294901760
    %1091 = vmatprep.subr.mxu0 %v1090
    %v1092 = vand.u32 %v585, 4294901760
    %v1093 = vsub.f32 %v585, %v1092
    %v1094 = vand.u32 %v1093, 4294901760
    %1095 = vmatpush1.msra.mxu0 %v1094
    %v1096 = vand.u32 %v592, 4294901760
    %v1097 = vsub.f32 %v592, %v1096
    %v1098 = vand.u32 %v1097, 4294901760
    %1099 = vmatprep.subr.mxu0 %v1098
    %v1100 = vand.u32 %v591, 4294901760
    %v1101 = vsub.f32 %v591, %v1100
    %v1102 = vand.u32 %v1101, 4294901760
    %1103 = vmatpush1.msra.mxu0 %v1102
    %v1104 = vand.u32 %v598, 4294901760
    %v1105 = vsub.f32 %v598, %v1104
    %v1106 = vand.u32 %v1105, 4294901760
    %1107 = vmatprep.subr.mxu0 %v1106
    %v1108 = vand.u32 %v597, 4294901760
    %v1109 = vsub.f32 %v597, %v1108
    %v1110 = vand.u32 %v1109, 4294901760
    %1111 = vmatpush1.msra.mxu0 %v1110
    %v1112 = vand.u32 %v604, 4294901760
    %v1113 = vsub.f32 %v604, %v1112
    %v1114 = vand.u32 %v1113, 4294901760
    %1115 = vmatprep.subr.mxu0 %v1114
    %v1116 = vand.u32 %v603, 4294901760
    %v1117 = vsub.f32 %v603, %v1116
    %v1118 = vand.u32 %v1117, 4294901760
    %1119 = vmatpush1.msra.mxu0 %v1118
    %v1120 = vand.u32 %v610, 4294901760
    %v1121 = vsub.f32 %v610, %v1120
    %v1122 = vand.u32 %v1121, 4294901760
    %1123 = vmatprep.subr.mxu0 %v1122
    %v1124 = vand.u32 %v609, 4294901760
    %v1125 = vsub.f32 %v609, %v1124
    %v1126 = vand.u32 %v1125, 4294901760
    %1127 = vmatpush1.msra.mxu0 %v1126
    %1128 = vmatprep.subr.mxu0 0.0
    %1129 = vmatpush1.msra.mxu0 0.0
    %1130 = vmatprep.subr.mxu0 0.0
    %1131 = vmatpush1.msra.mxu0 0.0
    %1132 = vmatprep.subr.mxu0 0.0
    %1133 = vmatpush1.msra.mxu0 0.0
    %1134 = vmatprep.subr.mxu0 0.0
    %1135 = vmatpush1.msra.mxu0 0.0
    %1136 = vmatprep.subr.mxu0 0.0
    %1137 = vmatpush1.msra.mxu0 0.0
    %1138 = vmatprep.subr.mxu0 0.0
    %1139 = vmatpush1.msra.mxu0 0.0
    %1140 = vmatprep.subr.mxu0 0.0
    %1141 = vmatpush1.msra.mxu0 0.0
    %1142 = vmatprep.subr.mxu0 0.0
    %1143 = vmatpush1.msra.mxu0 0.0
    %1144 = vmatprep.subr.mxu0 0.0
    %1145 = vmatpush1.msra.mxu0 0.0
    %1146 = vmatprep.subr.mxu0 0.0
    %1147 = vmatpush1.msra.mxu0 0.0
    %1148 = vmatprep.subr.mxu0 0.0
    %1149 = vmatpush1.msra.mxu0 0.0
    %1150 = vmatprep.subr.mxu0 0.0
    %1151 = vmatpush1.msra.mxu0 0.0
    %1152 = vmatprep.subr.mxu0 0.0
    %1153 = vmatpush1.msra.mxu0 0.0
    %1154 = vmatprep.subr.mxu0 0.0
    %1155 = vmatpush1.msra.mxu0 0.0
    %1156 = vmatprep.subr.mxu0 0.0
    %1157 = vmatpush1.msra.mxu0 0.0
    %1158 = vmatprep.subr.mxu0 0.0
    %1159 = vmatpush1.msra.mxu0 0.0
    %1160 = vmatprep.subr.mxu0 0.0
    %1161 = vmatpush1.msra.mxu0 0.0
    %1162 = vmatprep.subr.mxu0 0.0
    %1163 = vmatpush1.msra.mxu0 0.0
    %1164 = vmatprep.subr.mxu0 0.0
    %1165 = vmatpush1.msra.mxu0 0.0
    %1166 = vmatprep.subr.mxu0 0.0
    %1167 = vmatpush1.msra.mxu0 0.0
    %1168 = vmatprep.subr.mxu0 0.0
    %1169 = vmatpush1.msra.mxu0 0.0
    %1170 = vmatprep.subr.mxu0 0.0
    %1171 = vmatpush1.msra.mxu0 0.0
    %1172 = vmatprep.subr.mxu0 0.0
    %1173 = vmatpush1.msra.mxu0 0.0
    %1174 = vmatprep.subr.mxu0 0.0
    %1175 = vmatpush1.msra.mxu0 0.0
    %1176 = vmatprep.mubr.f32.mxu0 0.0
    %v1177 = vand.u32 %v623, 4294901760
    %1178 = vmatmul.mubr.f32.gmra.mrb[0].mxu0 %v1177
    %v1179 = vpop.f32.mrb[0].mxu0
    %v1180 = vadd.f32 %v1060, %v1179
    %v1181 = vpop.f32.mrb[0].mxu0
    %v1182 = vadd.f32 %v1062, %v1181
    %1183 = vdwg.mxu0
    %v1184 = vand.u32 %v568, 4294901760
    %1185 = vmatprep.subr.mxu0 %v1184
    %v1186 = vand.u32 %v567, 4294901760
    %1187 = vmatpush1.msra.mxu0 %v1186
    %v1188 = vand.u32 %v574, 4294901760
    %1189 = vmatprep.subr.mxu0 %v1188
    %v1190 = vand.u32 %v573, 4294901760
    %1191 = vmatpush1.msra.mxu0 %v1190
    %v1192 = vand.u32 %v580, 4294901760
    %1193 = vmatprep.subr.mxu0 %v1192
    %v1194 = vand.u32 %v579, 4294901760
    %1195 = vmatpush1.msra.mxu0 %v1194
    %v1196 = vand.u32 %v586, 4294901760
    %1197 = vmatprep.subr.mxu0 %v1196
    %v1198 = vand.u32 %v585, 4294901760
    %1199 = vmatpush1.msra.mxu0 %v1198
    %v1200 = vand.u32 %v592, 4294901760
    %1201 = vmatprep.subr.mxu0 %v1200
    %v1202 = vand.u32 %v591, 4294901760
    %1203 = vmatpush1.msra.mxu0 %v1202
    %v1204 = vand.u32 %v598, 4294901760
    %1205 = vmatprep.subr.mxu0 %v1204
    %v1206 = vand.u32 %v597, 4294901760
    %1207 = vmatpush1.msra.mxu0 %v1206
    %v1208 = vand.u32 %v604, 4294901760
    %1209 = vmatprep.subr.mxu0 %v1208
    %v1210 = vand.u32 %v603, 4294901760
    %1211 = vmatpush1.msra.mxu0 %v1210
    %v1212 = vand.u32 %v610, 4294901760
    %1213 = vmatprep.subr.mxu0 %v1212
    %v1214 = vand.u32 %v609, 4294901760
    %1215 = vmatpush1.msra.mxu0 %v1214
    %1216 = vmatprep.subr.mxu0 0.0
    %1217 = vmatpush1.msra.mxu0 0.0
    %1218 = vmatprep.subr.mxu0 0.0
    %1219 = vmatpush1.msra.mxu0 0.0
    %1220 = vmatprep.subr.mxu0 0.0
    %1221 = vmatpush1.msra.mxu0 0.0
    %1222 = vmatprep.subr.mxu0 0.0
    %1223 = vmatpush1.msra.mxu0 0.0
    %1224 = vmatprep.subr.mxu0 0.0
    %1225 = vmatpush1.msra.mxu0 0.0
    %1226 = vmatprep.subr.mxu0 0.0
    %1227 = vmatpush1.msra.mxu0 0.0
    %1228 = vmatprep.subr.mxu0 0.0
    %1229 = vmatpush1.msra.mxu0 0.0
    %1230 = vmatprep.subr.mxu0 0.0
    %1231 = vmatpush1.msra.mxu0 0.0
    %1232 = vmatprep.subr.mxu0 0.0
    %1233 = vmatpush1.msra.mxu0 0.0
    %1234 = vmatprep.subr.mxu0 0.0
    %1235 = vmatpush1.msra.mxu0 0.0
    %1236 = vmatprep.subr.mxu0 0.0
    %1237 = vmatpush1.msra.mxu0 0.0
    %1238 = vmatprep.subr.mxu0 0.0
    %1239 = vmatpush1.msra.mxu0 0.0
    %1240 = vmatprep.subr.mxu0 0.0
    %1241 = vmatpush1.msra.mxu0 0.0
    %1242 = vmatprep.subr.mxu0 0.0
    %1243 = vmatpush1.msra.mxu0 0.0
    %1244 = vmatprep.subr.mxu0 0.0
    %1245 = vmatpush1.msra.mxu0 0.0
    %1246 = vmatprep.subr.mxu0 0.0
    %1247 = vmatpush1.msra.mxu0 0.0
    %1248 = vmatprep.subr.mxu0 0.0
    %1249 = vmatpush1.msra.mxu0 0.0
    %1250 = vmatprep.subr.mxu0 0.0
    %1251 = vmatpush1.msra.mxu0 0.0
    %1252 = vmatprep.subr.mxu0 0.0
    %1253 = vmatpush1.msra.mxu0 0.0
    %1254 = vmatprep.subr.mxu0 0.0
    %1255 = vmatpush1.msra.mxu0 0.0
    %1256 = vmatprep.subr.mxu0 0.0
    %1257 = vmatpush1.msra.mxu0 0.0
    %1258 = vmatprep.subr.mxu0 0.0
    %1259 = vmatpush1.msra.mxu0 0.0
    %1260 = vmatprep.subr.mxu0 0.0
    %1261 = vmatpush1.msra.mxu0 0.0
    %1262 = vmatprep.subr.mxu0 0.0
    %1263 = vmatpush1.msra.mxu0 0.0
    %1264 = vmatprep.mubr.f32.mxu0 0.0
    %v1265 = vand.u32 %v623, 4294901760
    %1266 = vmatmul.mubr.f32.gmra.mrb[0].mxu0 %v1265
    %v1267 = vpop.f32.mrb[0].mxu0
    %v1268 = vadd.f32 %v1180, %v1267
    %v1269 = vpop.f32.mrb[0].mxu0
    %v1270 = vadd.f32 %v1182, %v1269
    %1271 = vdwg.mxu0
    %v1272 = vand.u32 %v570, 4294901760
    %1273 = vmatprep.subr.mxu0 %v1272
    %v1274 = vand.u32 %v569, 4294901760
    %1275 = vmatpush1.msra.mxu0 %v1274
    %v1276 = vand.u32 %v576, 4294901760
    %1277 = vmatprep.subr.mxu0 %v1276
    %v1278 = vand.u32 %v575, 4294901760
    %1279 = vmatpush1.msra.mxu0 %v1278
    %v1280 = vand.u32 %v582, 4294901760
    %1281 = vmatprep.subr.mxu0 %v1280
    %v1282 = vand.u32 %v581, 4294901760
    %1283 = vmatpush1.msra.mxu0 %v1282
    %v1284 = vand.u32 %v588, 4294901760
    %1285 = vmatprep.subr.mxu0 %v1284
    %v1286 = vand.u32 %v587, 4294901760
    %1287 = vmatpush1.msra.mxu0 %v1286
    %v1288 = vand.u32 %v594, 4294901760
    %1289 = vmatprep.subr.mxu0 %v1288
    %v1290 = vand.u32 %v593, 4294901760
    %1291 = vmatpush1.msra.mxu0 %v1290
    %v1292 = vand.u32 %v600, 4294901760
    %1293 = vmatprep.subr.mxu0 %v1292
    %v1294 = vand.u32 %v599, 4294901760
    %1295 = vmatpush1.msra.mxu0 %v1294
    %v1296 = vand.u32 %v606, 4294901760
    %1297 = vmatprep.subr.mxu0 %v1296
    %v1298 = vand.u32 %v605, 4294901760
    %1299 = vmatpush1.msra.mxu0 %v1298
    %v1300 = vand.u32 %v612, 4294901760
    %1301 = vmatprep.subr.mxu0 %v1300
    %v1302 = vand.u32 %v611, 4294901760
    %1303 = vmatpush1.msra.mxu0 %v1302
    %1304 = vmatprep.subr.mxu0 0.0
    %1305 = vmatpush1.msra.mxu0 0.0
    %1306 = vmatprep.subr.mxu0 0.0
    %1307 = vmatpush1.msra.mxu0 0.0
    %1308 = vmatprep.subr.mxu0 0.0
    %1309 = vmatpush1.msra.mxu0 0.0
    %1310 = vmatprep.subr.mxu0 0.0
    %1311 = vmatpush1.msra.mxu0 0.0
    %1312 = vmatprep.subr.mxu0 0.0
    %1313 = vmatpush1.msra.mxu0 0.0
    %1314 = vmatprep.subr.mxu0 0.0
    %1315 = vmatpush1.msra.mxu0 0.0
    %1316 = vmatprep.subr.mxu0 0.0
    %1317 = vmatpush1.msra.mxu0 0.0
    %1318 = vmatprep.subr.mxu0 0.0
    %1319 = vmatpush1.msra.mxu0 0.0
    %1320 = vmatprep.subr.mxu0 0.0
    %1321 = vmatpush1.msra.mxu0 0.0
    %1322 = vmatprep.subr.mxu0 0.0
    %1323 = vmatpush1.msra.mxu0 0.0
    %1324 = vmatprep.subr.mxu0 0.0
    %1325 = vmatpush1.msra.mxu0 0.0
    %1326 = vmatprep.subr.mxu0 0.0
    %1327 = vmatpush1.msra.mxu0 0.0
    %1328 = vmatprep.subr.mxu0 0.0
    %1329 = vmatpush1.msra.mxu0 0.0
    %1330 = vmatprep.subr.mxu0 0.0
    %1331 = vmatpush1.msra.mxu0 0.0
    %1332 = vmatprep.subr.mxu0 0.0
    %1333 = vmatpush1.msra.mxu0 0.0
    %1334 = vmatprep.subr.mxu0 0.0
    %1335 = vmatpush1.msra.mxu0 0.0
    %1336 = vmatprep.subr.mxu0 0.0
    %1337 = vmatpush1.msra.mxu0 0.0
    %1338 = vmatprep.subr.mxu0 0.0
    %1339 = vmatpush1.msra.mxu0 0.0
    %1340 = vmatprep.subr.mxu0 0.0
    %1341 = vmatpush1.msra.mxu0 0.0
    %1342 = vmatprep.subr.mxu0 0.0
    %1343 = vmatpush1.msra.mxu0 0.0
    %1344 = vmatprep.subr.mxu0 0.0
    %1345 = vmatpush1.msra.mxu0 0.0
    %1346 = vmatprep.subr.mxu0 0.0
    %1347 = vmatpush1.msra.mxu0 0.0
    %1348 = vmatprep.subr.mxu0 0.0
    %1349 = vmatpush1.msra.mxu0 0.0
    %1350 = vmatprep.subr.mxu0 0.0
    %1351 = vmatpush1.msra.mxu0 0.0
    %1352 = vmatprep.mubr.f32.mxu0 0.0
    %v1353 = vand.u32 %v623, 4294901760
    %v1354 = vsub.f32 %v623, %v1353
    %v1355 = vand.u32 %v1354, 4294901760
    %v1356 = vsub.f32 %v1354, %v1355
    %v1357 = vand.u32 %v1356, 4294901760
    %1358 = vmatmul.mubr.f32.gmra.mrb[0].mxu0 %v1357
    %v1359 = vpop.f32.mrb[0].mxu0
    %v1360 = vadd.f32 %v619, %v1359
    %v1361 = vpop.f32.mrb[0].mxu0
    %v1362 = vadd.f32 %v619, %v1361
    %1363 = vdwg.mxu0
    %v1364 = vand.u32 %v570, 4294901760
    %v1365 = vsub.f32 %v570, %v1364
    %v1366 = vand.u32 %v1365, 4294901760
    %v1367 = vsub.f32 %v1365, %v1366
    %v1368 = vand.u32 %v1367, 4294901760
    %1369 = vmatprep.subr.mxu0 %v1368
    %v1370 = vand.u32 %v569, 4294901760
    %v1371 = vsub.f32 %v569, %v1370
    %v1372 = vand.u32 %v1371, 4294901760
    %v1373 = vsub.f32 %v1371, %v1372
    %v1374 = vand.u32 %v1373, 4294901760
    %1375 = vmatpush1.msra.mxu0 %v1374
    %v1376 = vand.u32 %v576, 4294901760
    %v1377 = vsub.f32 %v576, %v1376
    %v1378 = vand.u32 %v1377, 4294901760
    %v1379 = vsub.f32 %v1377, %v1378
    %v1380 = vand.u32 %v1379, 4294901760
    %1381 = vmatprep.subr.mxu0 %v1380
    %v1382 = vand.u32 %v575, 4294901760
    %v1383 = vsub.f32 %v575, %v1382
    %v1384 = vand.u32 %v1383, 4294901760
    %v1385 = vsub.f32 %v1383, %v1384
    %v1386 = vand.u32 %v1385, 4294901760
    %1387 = vmatpush1.msra.mxu0 %v1386
    %v1388 = vand.u32 %v582, 4294901760
    %v1389 = vsub.f32 %v582, %v1388
    %v1390 = vand.u32 %v1389, 4294901760
    %v1391 = vsub.f32 %v1389, %v1390
    %v1392 = vand.u32 %v1391, 4294901760
    %1393 = vmatprep.subr.mxu0 %v1392
    %v1394 = vand.u32 %v581, 4294901760
    %v1395 = vsub.f32 %v581, %v1394
    %v1396 = vand.u32 %v1395, 4294901760
    %v1397 = vsub.f32 %v1395, %v1396
    %v1398 = vand.u32 %v1397, 4294901760
    %1399 = vmatpush1.msra.mxu0 %v1398
    %v1400 = vand.u32 %v588, 4294901760
    %v1401 = vsub.f32 %v588, %v1400
    %v1402 = vand.u32 %v1401, 4294901760
    %v1403 = vsub.f32 %v1401, %v1402
    %v1404 = vand.u32 %v1403, 4294901760
    %1405 = vmatprep.subr.mxu0 %v1404
    %v1406 = vand.u32 %v587, 4294901760
    %v1407 = vsub.f32 %v587, %v1406
    %v1408 = vand.u32 %v1407, 4294901760
    %v1409 = vsub.f32 %v1407, %v1408
    %v1410 = vand.u32 %v1409, 4294901760
    %1411 = vmatpush1.msra.mxu0 %v1410
    %v1412 = vand.u32 %v594, 4294901760
    %v1413 = vsub.f32 %v594, %v1412
    %v1414 = vand.u32 %v1413, 4294901760
    %v1415 = vsub.f32 %v1413, %v1414
    %v1416 = vand.u32 %v1415, 4294901760
    %1417 = vmatprep.subr.mxu0 %v1416
    %v1418 = vand.u32 %v593, 4294901760
    %v1419 = vsub.f32 %v593, %v1418
    %v1420 = vand.u32 %v1419, 4294901760
    %v1421 = vsub.f32 %v1419, %v1420
    %v1422 = vand.u32 %v1421, 4294901760
    %1423 = vmatpush1.msra.mxu0 %v1422
    %v1424 = vand.u32 %v600, 4294901760
    %v1425 = vsub.f32 %v600, %v1424
    %v1426 = vand.u32 %v1425, 4294901760
    %v1427 = vsub.f32 %v1425, %v1426
    %v1428 = vand.u32 %v1427, 4294901760
    %1429 = vmatprep.subr.mxu0 %v1428
    %v1430 = vand.u32 %v599, 4294901760
    %v1431 = vsub.f32 %v599, %v1430
    %v1432 = vand.u32 %v1431, 4294901760
    %v1433 = vsub.f32 %v1431, %v1432
    %v1434 = vand.u32 %v1433, 4294901760
    %1435 = vmatpush1.msra.mxu0 %v1434
    %v1436 = vand.u32 %v606, 4294901760
    %v1437 = vsub.f32 %v606, %v1436
    %v1438 = vand.u32 %v1437, 4294901760
    %v1439 = vsub.f32 %v1437, %v1438
    %v1440 = vand.u32 %v1439, 4294901760
    %1441 = vmatprep.subr.mxu0 %v1440
    %v1442 = vand.u32 %v605, 4294901760
    %v1443 = vsub.f32 %v605, %v1442
    %v1444 = vand.u32 %v1443, 4294901760
    %v1445 = vsub.f32 %v1443, %v1444
    %v1446 = vand.u32 %v1445, 4294901760
    %1447 = vmatpush1.msra.mxu0 %v1446
    %v1448 = vand.u32 %v612, 4294901760
    %v1449 = vsub.f32 %v612, %v1448
    %v1450 = vand.u32 %v1449, 4294901760
    %v1451 = vsub.f32 %v1449, %v1450
    %v1452 = vand.u32 %v1451, 4294901760
    %1453 = vmatprep.subr.mxu0 %v1452
    %v1454 = vand.u32 %v611, 4294901760
    %v1455 = vsub.f32 %v611, %v1454
    %v1456 = vand.u32 %v1455, 4294901760
    %v1457 = vsub.f32 %v1455, %v1456
    %v1458 = vand.u32 %v1457, 4294901760
    %1459 = vmatpush1.msra.mxu0 %v1458
    %1460 = vmatprep.subr.mxu0 0.0
    %1461 = vmatpush1.msra.mxu0 0.0
    %1462 = vmatprep.subr.mxu0 0.0
    %1463 = vmatpush1.msra.mxu0 0.0
    %1464 = vmatprep.subr.mxu0 0.0
    %1465 = vmatpush1.msra.mxu0 0.0
    %1466 = vmatprep.subr.mxu0 0.0
    %1467 = vmatpush1.msra.mxu0 0.0
    %1468 = vmatprep.subr.mxu0 0.0
    %1469 = vmatpush1.msra.mxu0 0.0
    %1470 = vmatprep.subr.mxu0 0.0
    %1471 = vmatpush1.msra.mxu0 0.0
    %1472 = vmatprep.subr.mxu0 0.0
    %1473 = vmatpush1.msra.mxu0 0.0
    %1474 = vmatprep.subr.mxu0 0.0
    %1475 = vmatpush1.msra.mxu0 0.0
    %1476 = vmatprep.subr.mxu0 0.0
    %1477 = vmatpush1.msra.mxu0 0.0
    %1478 = vmatprep.subr.mxu0 0.0
    %1479 = vmatpush1.msra.mxu0 0.0
    %1480 = vmatprep.subr.mxu0 0.0
    %1481 = vmatpush1.msra.mxu0 0.0
    %1482 = vmatprep.subr.mxu0 0.0
    %1483 = vmatpush1.msra.mxu0 0.0
    %1484 = vmatprep.subr.mxu0 0.0
    %1485 = vmatpush1.msra.mxu0 0.0
    %1486 = vmatprep.subr.mxu0 0.0
    %1487 = vmatpush1.msra.mxu0 0.0
    %1488 = vmatprep.subr.mxu0 0.0
    %1489 = vmatpush1.msra.mxu0 0.0
    %1490 = vmatprep.subr.mxu0 0.0
    %1491 = vmatpush1.msra.mxu0 0.0
    %1492 = vmatprep.subr.mxu0 0.0
    %1493 = vmatpush1.msra.mxu0 0.0
    %1494 = vmatprep.subr.mxu0 0.0
    %1495 = vmatpush1.msra.mxu0 0.0
    %1496 = vmatprep.subr.mxu0 0.0
    %1497 = vmatpush1.msra.mxu0 0.0
    %1498 = vmatprep.subr.mxu0 0.0
    %1499 = vmatpush1.msra.mxu0 0.0
    %1500 = vmatprep.subr.mxu0 0.0
    %1501 = vmatpush1.msra.mxu0 0.0
    %1502 = vmatprep.subr.mxu0 0.0
    %1503 = vmatpush1.msra.mxu0 0.0
    %1504 = vmatprep.subr.mxu0 0.0
    %1505 = vmatpush1.msra.mxu0 0.0
    %1506 = vmatprep.subr.mxu0 0.0
    %1507 = vmatpush1.msra.mxu0 0.0
    %1508 = vmatprep.mubr.f32.mxu0 0.0
    %v1509 = vand.u32 %v623, 4294901760
    %1510 = vmatmul.mubr.f32.gmra.mrb[0].mxu0 %v1509
    %v1511 = vpop.f32.mrb[0].mxu0
    %v1512 = vadd.f32 %v1360, %v1511
    %v1513 = vpop.f32.mrb[0].mxu0
    %v1514 = vadd.f32 %v1362, %v1513
    %1515 = vdwg.mxu0
    %v1516 = vand.u32 %v570, 4294901760
    %v1517 = vsub.f32 %v570, %v1516
    %1518 = vmatprep.subr.mxu0 %v1517
    %v1519 = vand.u32 %v569, 4294901760
    %v1520 = vsub.f32 %v569, %v1519
    %1521 = vmatpush1.msra.mxu0 %v1520
    %v1522 = vand.u32 %v576, 4294901760
    %v1523 = vsub.f32 %v576, %v1522
    %1524 = vmatprep.subr.mxu0 %v1523
    %v1525 = vand.u32 %v575, 4294901760
    %v1526 = vsub.f32 %v575, %v1525
    %1527 = vmatpush1.msra.mxu0 %v1526
    %v1528 = vand.u32 %v582, 4294901760
    %v1529 = vsub.f32 %v582, %v1528
    %1530 = vmatprep.subr.mxu0 %v1529
    %v1531 = vand.u32 %v581, 4294901760
    %v1532 = vsub.f32 %v581, %v1531
    %1533 = vmatpush1.msra.mxu0 %v1532
    %v1534 = vand.u32 %v588, 4294901760
    %v1535 = vsub.f32 %v588, %v1534
    %1536 = vmatprep.subr.mxu0 %v1535
    %v1537 = vand.u32 %v587, 4294901760
    %v1538 = vsub.f32 %v587, %v1537
    %1539 = vmatpush1.msra.mxu0 %v1538
    %v1540 = vand.u32 %v594, 4294901760
    %v1541 = vsub.f32 %v594, %v1540
    %1542 = vmatprep.subr.mxu0 %v1541
    %v1543 = vand.u32 %v593, 4294901760
    %v1544 = vsub.f32 %v593, %v1543
    %1545 = vmatpush1.msra.mxu0 %v1544
    %v1546 = vand.u32 %v600, 4294901760
    %v1547 = vsub.f32 %v600, %v1546
    %1548 = vmatprep.subr.mxu0 %v1547
    %v1549 = vand.u32 %v599, 4294901760
    %v1550 = vsub.f32 %v599, %v1549
    %1551 = vmatpush1.msra.mxu0 %v1550
    %v1552 = vand.u32 %v606, 4294901760
    %v1553 = vsub.f32 %v606, %v1552
    %1554 = vmatprep.subr.mxu0 %v1553
    %v1555 = vand.u32 %v605, 4294901760
    %v1556 = vsub.f32 %v605, %v1555
    %1557 = vmatpush1.msra.mxu0 %v1556
    %v1558 = vand.u32 %v612, 4294901760
    %v1559 = vsub.f32 %v612, %v1558
    %1560 = vmatprep.subr.mxu0 %v1559
    %v1561 = vand.u32 %v611, 4294901760
    %v1562 = vsub.f32 %v611, %v1561
    %1563 = vmatpush1.msra.mxu0 %v1562
    %1564 = vmatprep.subr.mxu0 0.0
    %1565 = vmatpush1.msra.mxu0 0.0
    %1566 = vmatprep.subr.mxu0 0.0
    %1567 = vmatpush1.msra.mxu0 0.0
    %1568 = vmatprep.subr.mxu0 0.0
    %1569 = vmatpush1.msra.mxu0 0.0
    %1570 = vmatprep.subr.mxu0 0.0
    %1571 = vmatpush1.msra.mxu0 0.0
    %1572 = vmatprep.subr.mxu0 0.0
    %1573 = vmatpush1.msra.mxu0 0.0
    %1574 = vmatprep.subr.mxu0 0.0
    %1575 = vmatpush1.msra.mxu0 0.0
    %1576 = vmatprep.subr.mxu0 0.0
    %1577 = vmatpush1.msra.mxu0 0.0
    %1578 = vmatprep.subr.mxu0 0.0
    %1579 = vmatpush1.msra.mxu0 0.0
    %1580 = vmatprep.subr.mxu0 0.0
    %1581 = vmatpush1.msra.mxu0 0.0
    %1582 = vmatprep.subr.mxu0 0.0
    %1583 = vmatpush1.msra.mxu0 0.0
    %1584 = vmatprep.subr.mxu0 0.0
    %1585 = vmatpush1.msra.mxu0 0.0
    %1586 = vmatprep.subr.mxu0 0.0
    %1587 = vmatpush1.msra.mxu0 0.0
    %1588 = vmatprep.subr.mxu0 0.0
    %1589 = vmatpush1.msra.mxu0 0.0
    %1590 = vmatprep.subr.mxu0 0.0
    %1591 = vmatpush1.msra.mxu0 0.0
    %1592 = vmatprep.subr.mxu0 0.0
    %1593 = vmatpush1.msra.mxu0 0.0
    %1594 = vmatprep.subr.mxu0 0.0
    %1595 = vmatpush1.msra.mxu0 0.0
    %1596 = vmatprep.subr.mxu0 0.0
    %1597 = vmatpush1.msra.mxu0 0.0
    %1598 = vmatprep.subr.mxu0 0.0
    %1599 = vmatpush1.msra.mxu0 0.0
    %1600 = vmatprep.subr.mxu0 0.0
    %1601 = vmatpush1.msra.mxu0 0.0
    %1602 = vmatprep.subr.mxu0 0.0
    %1603 = vmatpush1.msra.mxu0 0.0
    %1604 = vmatprep.subr.mxu0 0.0
    %1605 = vmatpush1.msra.mxu0 0.0
    %1606 = vmatprep.subr.mxu0 0.0
    %1607 = vmatpush1.msra.mxu0 0.0
    %1608 = vmatprep.subr.mxu0 0.0
    %1609 = vmatpush1.msra.mxu0 0.0
    %1610 = vmatprep.subr.mxu0 0.0
    %1611 = vmatpush1.msra.mxu0 0.0
    %1612 = vmatprep.mubr.f32.mxu0 0.0
    %v1613 = vand.u32 %v623, 4294901760
    %v1614 = vsub.f32 %v623, %v1613
    %1615 = vmatmul.mubr.f32.gmra.mrb[0].mxu0 %v1614
    %v1616 = vpop.f32.mrb[0].mxu0
    %v1617 = vadd.f32 %v1512, %v1616
    %v1618 = vpop.f32.mrb[0].mxu0
    %v1619 = vadd.f32 %v1514, %v1618
    %1620 = vdwg.mxu0
    %v1621 = vand.u32 %v570, 4294901760
    %1622 = vmatprep.subr.mxu0 %v1621
    %v1623 = vand.u32 %v569, 4294901760
    %1624 = vmatpush1.msra.mxu0 %v1623
    %v1625 = vand.u32 %v576, 4294901760
    %1626 = vmatprep.subr.mxu0 %v1625
    %v1627 = vand.u32 %v575, 4294901760
    %1628 = vmatpush1.msra.mxu0 %v1627
    %v1629 = vand.u32 %v582, 4294901760
    %1630 = vmatprep.subr.mxu0 %v1629
    %v1631 = vand.u32 %v581, 4294901760
    %1632 = vmatpush1.msra.mxu0 %v1631
    %v1633 = vand.u32 %v588, 4294901760
    %1634 = vmatprep.subr.mxu0 %v1633
    %v1635 = vand.u32 %v587, 4294901760
    %1636 = vmatpush1.msra.mxu0 %v1635
    %v1637 = vand.u32 %v594, 4294901760
    %1638 = vmatprep.subr.mxu0 %v1637
    %v1639 = vand.u32 %v593, 4294901760
    %1640 = vmatpush1.msra.mxu0 %v1639
    %v1641 = vand.u32 %v600, 4294901760
    %1642 = vmatprep.subr.mxu0 %v1641
    %v1643 = vand.u32 %v599, 4294901760
    %1644 = vmatpush1.msra.mxu0 %v1643
    %v1645 = vand.u32 %v606, 4294901760
    %1646 = vmatprep.subr.mxu0 %v1645
    %v1647 = vand.u32 %v605, 4294901760
    %1648 = vmatpush1.msra.mxu0 %v1647
    %v1649 = vand.u32 %v612, 4294901760
    %1650 = vmatprep.subr.mxu0 %v1649
    %v1651 = vand.u32 %v611, 4294901760
    %1652 = vmatpush1.msra.mxu0 %v1651
    %1653 = vmatprep.subr.mxu0 0.0
    %1654 = vmatpush1.msra.mxu0 0.0
    %1655 = vmatprep.subr.mxu0 0.0
    %1656 = vmatpush1.msra.mxu0 0.0
    %1657 = vmatprep.subr.mxu0 0.0
    %1658 = vmatpush1.msra.mxu0 0.0
    %1659 = vmatprep.subr.mxu0 0.0
    %1660 = vmatpush1.msra.mxu0 0.0
    %1661 = vmatprep.subr.mxu0 0.0
    %1662 = vmatpush1.msra.mxu0 0.0
    %1663 = vmatprep.subr.mxu0 0.0
    %1664 = vmatpush1.msra.mxu0 0.0
    %1665 = vmatprep.subr.mxu0 0.0
    %1666 = vmatpush1.msra.mxu0 0.0
    %1667 = vmatprep.subr.mxu0 0.0
    %1668 = vmatpush1.msra.mxu0 0.0
    %1669 = vmatprep.subr.mxu0 0.0
    %1670 = vmatpush1.msra.mxu0 0.0
    %1671 = vmatprep.subr.mxu0 0.0
    %1672 = vmatpush1.msra.mxu0 0.0
    %1673 = vmatprep.subr.mxu0 0.0
    %1674 = vmatpush1.msra.mxu0 0.0
    %1675 = vmatprep.subr.mxu0 0.0
    %1676 = vmatpush1.msra.mxu0 0.0
    %1677 = vmatprep.subr.mxu0 0.0
    %1678 = vmatpush1.msra.mxu0 0.0
    %1679 = vmatprep.subr.mxu0 0.0
    %1680 = vmatpush1.msra.mxu0 0.0
    %1681 = vmatprep.subr.mxu0 0.0
    %1682 = vmatpush1.msra.mxu0 0.0
    %1683 = vmatprep.subr.mxu0 0.0
    %1684 = vmatpush1.msra.mxu0 0.0
    %1685 = vmatprep.subr.mxu0 0.0
    %1686 = vmatpush1.msra.mxu0 0.0
    %1687 = vmatprep.subr.mxu0 0.0
    %1688 = vmatpush1.msra.mxu0 0.0
    %1689 = vmatprep.subr.mxu0 0.0
    %1690 = vmatpush1.msra.mxu0 0.0
    %1691 = vmatprep.subr.mxu0 0.0
    %1692 = vmatpush1.msra.mxu0 0.0
    %1693 = vmatprep.subr.mxu0 0.0
    %1694 = vmatpush1.msra.mxu0 0.0
    %1695 = vmatprep.subr.mxu0 0.0
    %1696 = vmatpush1.msra.mxu0 0.0
    %1697 = vmatprep.subr.mxu0 0.0
    %1698 = vmatpush1.msra.mxu0 0.0
    %1699 = vmatprep.subr.mxu0 0.0
    %1700 = vmatpush1.msra.mxu0 0.0
    %1701 = vmatprep.mubr.f32.mxu0 0.0
    %v1702 = vand.u32 %v623, 4294901760
    %v1703 = vsub.f32 %v623, %v1702
    %v1704 = vand.u32 %v1703, 4294901760
    %1705 = vmatmul.mubr.f32.gmra.mrb[0].mxu0 %v1704
    %v1706 = vpop.f32.mrb[0].mxu0
    %v1707 = vadd.f32 %v1617, %v1706
    %v1708 = vpop.f32.mrb[0].mxu0
    %v1709 = vadd.f32 %v1619, %v1708
    %1710 = vdwg.mxu0
    %v1711 = vand.u32 %v570, 4294901760
    %v1712 = vsub.f32 %v570, %v1711
    %v1713 = vand.u32 %v1712, 4294901760
    %1714 = vmatprep.subr.mxu0 %v1713
    %v1715 = vand.u32 %v569, 4294901760
    %v1716 = vsub.f32 %v569, %v1715
    %v1717 = vand.u32 %v1716, 4294901760
    %1718 = vmatpush1.msra.mxu0 %v1717
    %v1719 = vand.u32 %v576, 4294901760
    %v1720 = vsub.f32 %v576, %v1719
    %v1721 = vand.u32 %v1720, 4294901760
    %1722 = vmatprep.subr.mxu0 %v1721
    %v1723 = vand.u32 %v575, 4294901760
    %v1724 = vsub.f32 %v575, %v1723
    %v1725 = vand.u32 %v1724, 4294901760
    %1726 = vmatpush1.msra.mxu0 %v1725
    %v1727 = vand.u32 %v582, 4294901760
    %v1728 = vsub.f32 %v582, %v1727
    %v1729 = vand.u32 %v1728, 4294901760
    %1730 = vmatprep.subr.mxu0 %v1729
    %v1731 = vand.u32 %v581, 4294901760
    %v1732 = vsub.f32 %v581, %v1731
    %v1733 = vand.u32 %v1732, 4294901760
    %1734 = vmatpush1.msra.mxu0 %v1733
    %v1735 = vand.u32 %v588, 4294901760
    %v1736 = vsub.f32 %v588, %v1735
    %v1737 = vand.u32 %v1736, 4294901760
    %1738 = vmatprep.subr.mxu0 %v1737
    %v1739 = vand.u32 %v587, 4294901760
    %v1740 = vsub.f32 %v587, %v1739
    %v1741 = vand.u32 %v1740, 4294901760
    %1742 = vmatpush1.msra.mxu0 %v1741
    %v1743 = vand.u32 %v594, 4294901760
    %v1744 = vsub.f32 %v594, %v1743
    %v1745 = vand.u32 %v1744, 4294901760
    %1746 = vmatprep.subr.mxu0 %v1745
    %v1747 = vand.u32 %v593, 4294901760
    %v1748 = vsub.f32 %v593, %v1747
    %v1749 = vand.u32 %v1748, 4294901760
    %1750 = vmatpush1.msra.mxu0 %v1749
    %v1751 = vand.u32 %v600, 4294901760
    %v1752 = vsub.f32 %v600, %v1751
    %v1753 = vand.u32 %v1752, 4294901760
    %1754 = vmatprep.subr.mxu0 %v1753
    %v1755 = vand.u32 %v599, 4294901760
    %v1756 = vsub.f32 %v599, %v1755
    %v1757 = vand.u32 %v1756, 4294901760
    %1758 = vmatpush1.msra.mxu0 %v1757
    %v1759 = vand.u32 %v606, 4294901760
    %v1760 = vsub.f32 %v606, %v1759
    %v1761 = vand.u32 %v1760, 4294901760
    %1762 = vmatprep.subr.mxu0 %v1761
    %v1763 = vand.u32 %v605, 4294901760
    %v1764 = vsub.f32 %v605, %v1763
    %v1765 = vand.u32 %v1764, 4294901760
    %1766 = vmatpush1.msra.mxu0 %v1765
    %v1767 = vand.u32 %v612, 4294901760
    %v1768 = vsub.f32 %v612, %v1767
    %v1769 = vand.u32 %v1768, 4294901760
    %1770 = vmatprep.subr.mxu0 %v1769
    %v1771 = vand.u32 %v611, 4294901760
    %v1772 = vsub.f32 %v611, %v1771
    %v1773 = vand.u32 %v1772, 4294901760
    %1774 = vmatpush1.msra.mxu0 %v1773
    %1775 = vmatprep.subr.mxu0 0.0
    %1776 = vmatpush1.msra.mxu0 0.0
    %1777 = vmatprep.subr.mxu0 0.0
    %1778 = vmatpush1.msra.mxu0 0.0
    %1779 = vmatprep.subr.mxu0 0.0
    %1780 = vmatpush1.msra.mxu0 0.0
    %1781 = vmatprep.subr.mxu0 0.0
    %1782 = vmatpush1.msra.mxu0 0.0
    %1783 = vmatprep.subr.mxu0 0.0
    %1784 = vmatpush1.msra.mxu0 0.0
    %1785 = vmatprep.subr.mxu0 0.0
    %1786 = vmatpush1.msra.mxu0 0.0
    %1787 = vmatprep.subr.mxu0 0.0
    %1788 = vmatpush1.msra.mxu0 0.0
    %1789 = vmatprep.subr.mxu0 0.0
    %1790 = vmatpush1.msra.mxu0 0.0
    %1791 = vmatprep.subr.mxu0 0.0
    %1792 = vmatpush1.msra.mxu0 0.0
    %1793 = vmatprep.subr.mxu0 0.0
    %1794 = vmatpush1.msra.mxu0 0.0
    %1795 = vmatprep.subr.mxu0 0.0
    %1796 = vmatpush1.msra.mxu0 0.0
    %1797 = vmatprep.subr.mxu0 0.0
    %1798 = vmatpush1.msra.mxu0 0.0
    %1799 = vmatprep.subr.mxu0 0.0
    %1800 = vmatpush1.msra.mxu0 0.0
    %1801 = vmatprep.subr.mxu0 0.0
    %1802 = vmatpush1.msra.mxu0 0.0
    %1803 = vmatprep.subr.mxu0 0.0
    %1804 = vmatpush1.msra.mxu0 0.0
    %1805 = vmatprep.subr.mxu0 0.0
    %1806 = vmatpush1.msra.mxu0 0.0
    %1807 = vmatprep.subr.mxu0 0.0
    %1808 = vmatpush1.msra.mxu0 0.0
    %1809 = vmatprep.subr.mxu0 0.0
    %1810 = vmatpush1.msra.mxu0 0.0
    %1811 = vmatprep.subr.mxu0 0.0
    %1812 = vmatpush1.msra.mxu0 0.0
    %1813 = vmatprep.subr.mxu0 0.0
    %1814 = vmatpush1.msra.mxu0 0.0
    %1815 = vmatprep.subr.mxu0 0.0
    %1816 = vmatpush1.msra.mxu0 0.0
    %1817 = vmatprep.subr.mxu0 0.0
    %1818 = vmatpush1.msra.mxu0 0.0
    %1819 = vmatprep.subr.mxu0 0.0
    %1820 = vmatpush1.msra.mxu0 0.0
    %1821 = vmatprep.subr.mxu0 0.0
    %1822 = vmatpush1.msra.mxu0 0.0
    %1823 = vmatprep.mubr.f32.mxu0 0.0
    %v1824 = vand.u32 %v623, 4294901760
    %1825 = vmatmul.mubr.f32.gmra.mrb[0].mxu0 %v1824
    %v1826 = vpop.f32.mrb[0].mxu0
    %v1827 = vadd.f32 %v1707, %v1826
    %v1828 = vpop.f32.mrb[0].mxu0
    %v1829 = vadd.f32 %v1709, %v1828
    %1830 = vdwg.mxu0
    %v1831 = vand.u32 %v570, 4294901760
    %1832 = vmatprep.subr.mxu0 %v1831
    %v1833 = vand.u32 %v569, 4294901760
    %1834 = vmatpush1.msra.mxu0 %v1833
    %v1835 = vand.u32 %v576, 4294901760
    %1836 = vmatprep.subr.mxu0 %v1835
    %v1837 = vand.u32 %v575, 4294901760
    %1838 = vmatpush1.msra.mxu0 %v1837
    %v1839 = vand.u32 %v582, 4294901760
    %1840 = vmatprep.subr.mxu0 %v1839
    %v1841 = vand.u32 %v581, 4294901760
    %1842 = vmatpush1.msra.mxu0 %v1841
    %v1843 = vand.u32 %v588, 4294901760
    %1844 = vmatprep.subr.mxu0 %v1843
    %v1845 = vand.u32 %v587, 4294901760
    %1846 = vmatpush1.msra.mxu0 %v1845
    %v1847 = vand.u32 %v594, 4294901760
    %1848 = vmatprep.subr.mxu0 %v1847
    %v1849 = vand.u32 %v593, 4294901760
    %1850 = vmatpush1.msra.mxu0 %v1849
    %v1851 = vand.u32 %v600, 4294901760
    %1852 = vmatprep.subr.mxu0 %v1851
    %v1853 = vand.u32 %v599, 4294901760
    %1854 = vmatpush1.msra.mxu0 %v1853
    %v1855 = vand.u32 %v606, 4294901760
    %1856 = vmatprep.subr.mxu0 %v1855
    %v1857 = vand.u32 %v605, 4294901760
    %1858 = vmatpush1.msra.mxu0 %v1857
    %v1859 = vand.u32 %v612, 4294901760
    %1860 = vmatprep.subr.mxu0 %v1859
    %v1861 = vand.u32 %v611, 4294901760
    %1862 = vmatpush1.msra.mxu0 %v1861
    %1863 = vmatprep.subr.mxu0 0.0
    %1864 = vmatpush1.msra.mxu0 0.0
    %1865 = vmatprep.subr.mxu0 0.0
    %1866 = vmatpush1.msra.mxu0 0.0
    %1867 = vmatprep.subr.mxu0 0.0
    %1868 = vmatpush1.msra.mxu0 0.0
    %1869 = vmatprep.subr.mxu0 0.0
    %1870 = vmatpush1.msra.mxu0 0.0
    %1871 = vmatprep.subr.mxu0 0.0
    %1872 = vmatpush1.msra.mxu0 0.0
    %1873 = vmatprep.subr.mxu0 0.0
    %1874 = vmatpush1.msra.mxu0 0.0
    %1875 = vmatprep.subr.mxu0 0.0
    %1876 = vmatpush1.msra.mxu0 0.0
    %1877 = vmatprep.subr.mxu0 0.0
    %1878 = vmatpush1.msra.mxu0 0.0
    %1879 = vmatprep.subr.mxu0 0.0
    %1880 = vmatpush1.msra.mxu0 0.0
    %1881 = vmatprep.subr.mxu0 0.0
    %1882 = vmatpush1.msra.mxu0 0.0
    %1883 = vmatprep.subr.mxu0 0.0
    %1884 = vmatpush1.msra.mxu0 0.0
    %1885 = vmatprep.subr.mxu0 0.0
    %1886 = vmatpush1.msra.mxu0 0.0
    %1887 = vmatprep.subr.mxu0 0.0
    %1888 = vmatpush1.msra.mxu0 0.0
    %1889 = vmatprep.subr.mxu0 0.0
    %1890 = vmatpush1.msra.mxu0 0.0
    %1891 = vmatprep.subr.mxu0 0.0
    %1892 = vmatpush1.msra.mxu0 0.0
    %1893 = vmatprep.subr.mxu0 0.0
    %1894 = vmatpush1.msra.mxu0 0.0
    %1895 = vmatprep.subr.mxu0 0.0
    %1896 = vmatpush1.msra.mxu0 0.0
    %1897 = vmatprep.subr.mxu0 0.0
    %1898 = vmatpush1.msra.mxu0 0.0
    %1899 = vmatprep.subr.mxu0 0.0
    %1900 = vmatpush1.msra.mxu0 0.0
    %1901 = vmatprep.subr.mxu0 0.0
    %1902 = vmatpush1.msra.mxu0 0.0
    %1903 = vmatprep.subr.mxu0 0.0
    %1904 = vmatpush1.msra.mxu0 0.0
    %1905 = vmatprep.subr.mxu0 0.0
    %1906 = vmatpush1.msra.mxu0 0.0
    %1907 = vmatprep.subr.mxu0 0.0
    %1908 = vmatpush1.msra.mxu0 0.0
    %1909 = vmatprep.subr.mxu0 0.0
    %1910 = vmatpush1.msra.mxu0 0.0
    %1911 = vmatprep.mubr.f32.mxu0 0.0
    %v1912 = vand.u32 %v623, 4294901760
    %1913 = vmatmul.mubr.f32.gmra.mrb[0].mxu0 %v1912
    %v1914 = vpop.f32.mrb[0].mxu0
    %v1915 = vadd.f32 %v1827, %v1914
    %v1916 = vpop.f32.mrb[0].mxu0
    %v1917 = vadd.f32 %v1829, %v1916
    %1918 = vdwg.mxu0
    %v1919 = vand.u32 %v572, 4294901760
    %1920 = vmatprep.subr.mxu0 %v1919
    %v1921 = vand.u32 %v571, 4294901760
    %1922 = vmatpush1.msra.mxu0 %v1921
    %v1923 = vand.u32 %v578, 4294901760
    %1924 = vmatprep.subr.mxu0 %v1923
    %v1925 = vand.u32 %v577, 4294901760
    %1926 = vmatpush1.msra.mxu0 %v1925
    %v1927 = vand.u32 %v584, 4294901760
    %1928 = vmatprep.subr.mxu0 %v1927
    %v1929 = vand.u32 %v583, 4294901760
    %1930 = vmatpush1.msra.mxu0 %v1929
    %v1931 = vand.u32 %v590, 4294901760
    %1932 = vmatprep.subr.mxu0 %v1931
    %v1933 = vand.u32 %v589, 4294901760
    %1934 = vmatpush1.msra.mxu0 %v1933
    %v1935 = vand.u32 %v596, 4294901760
    %1936 = vmatprep.subr.mxu0 %v1935
    %v1937 = vand.u32 %v595, 4294901760
    %1938 = vmatpush1.msra.mxu0 %v1937
    %v1939 = vand.u32 %v602, 4294901760
    %1940 = vmatprep.subr.mxu0 %v1939
    %v1941 = vand.u32 %v601, 4294901760
    %1942 = vmatpush1.msra.mxu0 %v1941
    %v1943 = vand.u32 %v608, 4294901760
    %1944 = vmatprep.subr.mxu0 %v1943
    %v1945 = vand.u32 %v607, 4294901760
    %1946 = vmatpush1.msra.mxu0 %v1945
    %v1947 = vand.u32 %v614, 4294901760
    %1948 = vmatprep.subr.mxu0 %v1947
    %v1949 = vand.u32 %v613, 4294901760
    %1950 = vmatpush1.msra.mxu0 %v1949
    %1951 = vmatprep.subr.mxu0 0.0
    %1952 = vmatpush1.msra.mxu0 0.0
    %1953 = vmatprep.subr.mxu0 0.0
    %1954 = vmatpush1.msra.mxu0 0.0
    %1955 = vmatprep.subr.mxu0 0.0
    %1956 = vmatpush1.msra.mxu0 0.0
    %1957 = vmatprep.subr.mxu0 0.0
    %1958 = vmatpush1.msra.mxu0 0.0
    %1959 = vmatprep.subr.mxu0 0.0
    %1960 = vmatpush1.msra.mxu0 0.0
    %1961 = vmatprep.subr.mxu0 0.0
    %1962 = vmatpush1.msra.mxu0 0.0
    %1963 = vmatprep.subr.mxu0 0.0
    %1964 = vmatpush1.msra.mxu0 0.0
    %1965 = vmatprep.subr.mxu0 0.0
    %1966 = vmatpush1.msra.mxu0 0.0
    %1967 = vmatprep.subr.mxu0 0.0
    %1968 = vmatpush1.msra.mxu0 0.0
    %1969 = vmatprep.subr.mxu0 0.0
    %1970 = vmatpush1.msra.mxu0 0.0
    %1971 = vmatprep.subr.mxu0 0.0
    %1972 = vmatpush1.msra.mxu0 0.0
    %1973 = vmatprep.subr.mxu0 0.0
    %1974 = vmatpush1.msra.mxu0 0.0
    %1975 = vmatprep.subr.mxu0 0.0
    %1976 = vmatpush1.msra.mxu0 0.0
    %1977 = vmatprep.subr.mxu0 0.0
    %1978 = vmatpush1.msra.mxu0 0.0
    %1979 = vmatprep.subr.mxu0 0.0
    %1980 = vmatpush1.msra.mxu0 0.0
    %1981 = vmatprep.subr.mxu0 0.0
    %1982 = vmatpush1.msra.mxu0 0.0
    %1983 = vmatprep.subr.mxu0 0.0
    %1984 = vmatpush1.msra.mxu0 0.0
    %1985 = vmatprep.subr.mxu0 0.0
    %1986 = vmatpush1.msra.mxu0 0.0
    %1987 = vmatprep.subr.mxu0 0.0
    %1988 = vmatpush1.msra.mxu0 0.0
    %1989 = vmatprep.subr.mxu0 0.0
    %1990 = vmatpush1.msra.mxu0 0.0
    %1991 = vmatprep.subr.mxu0 0.0
    %1992 = vmatpush1.msra.mxu0 0.0
    %1993 = vmatprep.subr.mxu0 0.0
    %1994 = vmatpush1.msra.mxu0 0.0
    %1995 = vmatprep.subr.mxu0 0.0
    %1996 = vmatpush1.msra.mxu0 0.0
    %1997 = vmatprep.subr.mxu0 0.0
    %1998 = vmatpush1.msra.mxu0 0.0
    %1999 = vmatprep.mubr.f32.mxu0 0.0
    %v2000 = vand.u32 %v623, 4294901760
    %v2001 = vsub.f32 %v623, %v2000
    %v2002 = vand.u32 %v2001, 4294901760
    %v2003 = vsub.f32 %v2001, %v2002
    %v2004 = vand.u32 %v2003, 4294901760
    %2005 = vmatmul.mubr.f32.gmra.mrb[0].mxu0 %v2004
    %v2006 = vpop.f32.mrb[0].mxu0
    %v2007 = vadd.f32 %v619, %v2006
    %v2008 = vpop.f32.mrb[0].mxu0
    %v2009 = vadd.f32 %v619, %v2008
    %2010 = vdwg.mxu0
    %v2011 = vand.u32 %v572, 4294901760
    %v2012 = vsub.f32 %v572, %v2011
    %v2013 = vand.u32 %v2012, 4294901760
    %v2014 = vsub.f32 %v2012, %v2013
    %v2015 = vand.u32 %v2014, 4294901760
    %2016 = vmatprep.subr.mxu0 %v2015
    %v2017 = vand.u32 %v571, 4294901760
    %v2018 = vsub.f32 %v571, %v2017
    %v2019 = vand.u32 %v2018, 4294901760
    %v2020 = vsub.f32 %v2018, %v2019
    %v2021 = vand.u32 %v2020, 4294901760
    %2022 = vmatpush1.msra.mxu0 %v2021
    %v2023 = vand.u32 %v578, 4294901760
    %v2024 = vsub.f32 %v578, %v2023
    %v2025 = vand.u32 %v2024, 4294901760
    %v2026 = vsub.f32 %v2024, %v2025
    %v2027 = vand.u32 %v2026, 4294901760
    %2028 = vmatprep.subr.mxu0 %v2027
    %v2029 = vand.u32 %v577, 4294901760
    %v2030 = vsub.f32 %v577, %v2029
    %v2031 = vand.u32 %v2030, 4294901760
    %v2032 = vsub.f32 %v2030, %v2031
    %v2033 = vand.u32 %v2032, 4294901760
    %2034 = vmatpush1.msra.mxu0 %v2033
    %v2035 = vand.u32 %v584, 4294901760
    %v2036 = vsub.f32 %v584, %v2035
    %v2037 = vand.u32 %v2036, 4294901760
    %v2038 = vsub.f32 %v2036, %v2037
    %v2039 = vand.u32 %v2038, 4294901760
    %2040 = vmatprep.subr.mxu0 %v2039
    %v2041 = vand.u32 %v583, 4294901760
    %v2042 = vsub.f32 %v583, %v2041
    %v2043 = vand.u32 %v2042, 4294901760
    %v2044 = vsub.f32 %v2042, %v2043
    %v2045 = vand.u32 %v2044, 4294901760
    %2046 = vmatpush1.msra.mxu0 %v2045
    %v2047 = vand.u32 %v590, 4294901760
    %v2048 = vsub.f32 %v590, %v2047
    %v2049 = vand.u32 %v2048, 4294901760
    %v2050 = vsub.f32 %v2048, %v2049
    %v2051 = vand.u32 %v2050, 4294901760
    %2052 = vmatprep.subr.mxu0 %v2051
    %v2053 = vand.u32 %v589, 4294901760
    %v2054 = vsub.f32 %v589, %v2053
    %v2055 = vand.u32 %v2054, 4294901760
    %v2056 = vsub.f32 %v2054, %v2055
    %v2057 = vand.u32 %v2056, 4294901760
    %2058 = vmatpush1.msra.mxu0 %v2057
    %v2059 = vand.u32 %v596, 4294901760
    %v2060 = vsub.f32 %v596, %v2059
    %v2061 = vand.u32 %v2060, 4294901760
    %v2062 = vsub.f32 %v2060, %v2061
    %v2063 = vand.u32 %v2062, 4294901760
    %2064 = vmatprep.subr.mxu0 %v2063
    %v2065 = vand.u32 %v595, 4294901760
    %v2066 = vsub.f32 %v595, %v2065
    %v2067 = vand.u32 %v2066, 4294901760
    %v2068 = vsub.f32 %v2066, %v2067
    %v2069 = vand.u32 %v2068, 4294901760
    %2070 = vmatpush1.msra.mxu0 %v2069
    %v2071 = vand.u32 %v602, 4294901760
    %v2072 = vsub.f32 %v602, %v2071
    %v2073 = vand.u32 %v2072, 4294901760
    %v2074 = vsub.f32 %v2072, %v2073
    %v2075 = vand.u32 %v2074, 4294901760
    %2076 = vmatprep.subr.mxu0 %v2075
    %v2077 = vand.u32 %v601, 4294901760
    %v2078 = vsub.f32 %v601, %v2077
    %v2079 = vand.u32 %v2078, 4294901760
    %v2080 = vsub.f32 %v2078, %v2079
    %v2081 = vand.u32 %v2080, 4294901760
    %2082 = vmatpush1.msra.mxu0 %v2081
    %v2083 = vand.u32 %v608, 4294901760
    %v2084 = vsub.f32 %v608, %v2083
    %v2085 = vand.u32 %v2084, 4294901760
    %v2086 = vsub.f32 %v2084, %v2085
    %v2087 = vand.u32 %v2086, 4294901760
    %2088 = vmatprep.subr.mxu0 %v2087
    %v2089 = vand.u32 %v607, 4294901760
    %v2090 = vsub.f32 %v607, %v2089
    %v2091 = vand.u32 %v2090, 4294901760
    %v2092 = vsub.f32 %v2090, %v2091
    %v2093 = vand.u32 %v2092, 4294901760
    %2094 = vmatpush1.msra.mxu0 %v2093
    %v2095 = vand.u32 %v614, 4294901760
    %v2096 = vsub.f32 %v614, %v2095
    %v2097 = vand.u32 %v2096, 4294901760
    %v2098 = vsub.f32 %v2096, %v2097
    %v2099 = vand.u32 %v2098, 4294901760
    %2100 = vmatprep.subr.mxu0 %v2099
    %v2101 = vand.u32 %v613, 4294901760
    %v2102 = vsub.f32 %v613, %v2101
    %v2103 = vand.u32 %v2102, 4294901760
    %v2104 = vsub.f32 %v2102, %v2103
    %v2105 = vand.u32 %v2104, 4294901760
    %2106 = vmatpush1.msra.mxu0 %v2105
    %2107 = vmatprep.subr.mxu0 0.0
    %2108 = vmatpush1.msra.mxu0 0.0
    %2109 = vmatprep.subr.mxu0 0.0
    %2110 = vmatpush1.msra.mxu0 0.0
    %2111 = vmatprep.subr.mxu0 0.0
    %2112 = vmatpush1.msra.mxu0 0.0
    %2113 = vmatprep.subr.mxu0 0.0
    %2114 = vmatpush1.msra.mxu0 0.0
    %2115 = vmatprep.subr.mxu0 0.0
    %2116 = vmatpush1.msra.mxu0 0.0
    %2117 = vmatprep.subr.mxu0 0.0
    %2118 = vmatpush1.msra.mxu0 0.0
    %2119 = vmatprep.subr.mxu0 0.0
    %2120 = vmatpush1.msra.mxu0 0.0
    %2121 = vmatprep.subr.mxu0 0.0
    %2122 = vmatpush1.msra.mxu0 0.0
    %2123 = vmatprep.subr.mxu0 0.0
    %2124 = vmatpush1.msra.mxu0 0.0
    %2125 = vmatprep.subr.mxu0 0.0
    %2126 = vmatpush1.msra.mxu0 0.0
    %2127 = vmatprep.subr.mxu0 0.0
    %2128 = vmatpush1.msra.mxu0 0.0
    %2129 = vmatprep.subr.mxu0 0.0
    %2130 = vmatpush1.msra.mxu0 0.0
    %2131 = vmatprep.subr.mxu0 0.0
    %2132 = vmatpush1.msra.mxu0 0.0
    %2133 = vmatprep.subr.mxu0 0.0
    %2134 = vmatpush1.msra.mxu0 0.0
    %2135 = vmatprep.subr.mxu0 0.0
    %2136 = vmatpush1.msra.mxu0 0.0
    %2137 = vmatprep.subr.mxu0 0.0
    %2138 = vmatpush1.msra.mxu0 0.0
    %2139 = vmatprep.subr.mxu0 0.0
    %2140 = vmatpush1.msra.mxu0 0.0
    %2141 = vmatprep.subr.mxu0 0.0
    %2142 = vmatpush1.msra.mxu0 0.0
    %2143 = vmatprep.subr.mxu0 0.0
    %2144 = vmatpush1.msra.mxu0 0.0
    %2145 = vmatprep.subr.mxu0 0.0
    %2146 = vmatpush1.msra.mxu0 0.0
    %2147 = vmatprep.subr.mxu0 0.0
    %2148 = vmatpush1.msra.mxu0 0.0
    %2149 = vmatprep.subr.mxu0 0.0
    %2150 = vmatpush1.msra.mxu0 0.0
    %2151 = vmatprep.subr.mxu0 0.0
    %2152 = vmatpush1.msra.mxu0 0.0
    %2153 = vmatprep.subr.mxu0 0.0
    %2154 = vmatpush1.msra.mxu0 0.0
    %2155 = vmatprep.mubr.f32.mxu0 0.0
    %v2156 = vand.u32 %v623, 4294901760
    %2157 = vmatmul.mubr.f32.gmra.mrb[0].mxu0 %v2156
    %v2158 = vpop.f32.mrb[0].mxu0
    %v2159 = vadd.f32 %v2007, %v2158
    %v2160 = vpop.f32.mrb[0].mxu0
    %v2161 = vadd.f32 %v2009, %v2160
    %2162 = vdwg.mxu0
    %v2163 = vand.u32 %v572, 4294901760
    %v2164 = vsub.f32 %v572, %v2163
    %2165 = vmatprep.subr.mxu0 %v2164
    %v2166 = vand.u32 %v571, 4294901760
    %v2167 = vsub.f32 %v571, %v2166
    %2168 = vmatpush1.msra.mxu0 %v2167
    %v2169 = vand.u32 %v578, 4294901760
    %v2170 = vsub.f32 %v578, %v2169
    %2171 = vmatprep.subr.mxu0 %v2170
    %v2172 = vand.u32 %v577, 4294901760
    %v2173 = vsub.f32 %v577, %v2172
    %2174 = vmatpush1.msra.mxu0 %v2173
    %v2175 = vand.u32 %v584, 4294901760
    %v2176 = vsub.f32 %v584, %v2175
    %2177 = vmatprep.subr.mxu0 %v2176
    %v2178 = vand.u32 %v583, 4294901760
    %v2179 = vsub.f32 %v583, %v2178
    %2180 = vmatpush1.msra.mxu0 %v2179
    %v2181 = vand.u32 %v590, 4294901760
    %v2182 = vsub.f32 %v590, %v2181
    %2183 = vmatprep.subr.mxu0 %v2182
    %v2184 = vand.u32 %v589, 4294901760
    %v2185 = vsub.f32 %v589, %v2184
    %2186 = vmatpush1.msra.mxu0 %v2185
    %v2187 = vand.u32 %v596, 4294901760
    %v2188 = vsub.f32 %v596, %v2187
    %2189 = vmatprep.subr.mxu0 %v2188
    %v2190 = vand.u32 %v595, 4294901760
    %v2191 = vsub.f32 %v595, %v2190
    %2192 = vmatpush1.msra.mxu0 %v2191
    %v2193 = vand.u32 %v602, 4294901760
    %v2194 = vsub.f32 %v602, %v2193
    %2195 = vmatprep.subr.mxu0 %v2194
    %v2196 = vand.u32 %v601, 4294901760
    %v2197 = vsub.f32 %v601, %v2196
    %2198 = vmatpush1.msra.mxu0 %v2197
    %v2199 = vand.u32 %v608, 4294901760
    %v2200 = vsub.f32 %v608, %v2199
    %2201 = vmatprep.subr.mxu0 %v2200
    %v2202 = vand.u32 %v607, 4294901760
    %v2203 = vsub.f32 %v607, %v2202
    %2204 = vmatpush1.msra.mxu0 %v2203
    %v2205 = vand.u32 %v614, 4294901760
    %v2206 = vsub.f32 %v614, %v2205
    %2207 = vmatprep.subr.mxu0 %v2206
    %v2208 = vand.u32 %v613, 4294901760
    %v2209 = vsub.f32 %v613, %v2208
    %2210 = vmatpush1.msra.mxu0 %v2209
    %2211 = vmatprep.subr.mxu0 0.0
    %2212 = vmatpush1.msra.mxu0 0.0
    %2213 = vmatprep.subr.mxu0 0.0
    %2214 = vmatpush1.msra.mxu0 0.0
    %2215 = vmatprep.subr.mxu0 0.0
    %2216 = vmatpush1.msra.mxu0 0.0
    %2217 = vmatprep.subr.mxu0 0.0
    %2218 = vmatpush1.msra.mxu0 0.0
    %2219 = vmatprep.subr.mxu0 0.0
    %2220 = vmatpush1.msra.mxu0 0.0
    %2221 = vmatprep.subr.mxu0 0.0
    %2222 = vmatpush1.msra.mxu0 0.0
    %2223 = vmatprep.subr.mxu0 0.0
    %2224 = vmatpush1.msra.mxu0 0.0
    %2225 = vmatprep.subr.mxu0 0.0
    %2226 = vmatpush1.msra.mxu0 0.0
    %2227 = vmatprep.subr.mxu0 0.0
    %2228 = vmatpush1.msra.mxu0 0.0
    %2229 = vmatprep.subr.mxu0 0.0
    %2230 = vmatpush1.msra.mxu0 0.0
    %2231 = vmatprep.subr.mxu0 0.0
    %2232 = vmatpush1.msra.mxu0 0.0
    %2233 = vmatprep.subr.mxu0 0.0
    %2234 = vmatpush1.msra.mxu0 0.0
    %2235 = vmatprep.subr.mxu0 0.0
    %2236 = vmatpush1.msra.mxu0 0.0
    %2237 = vmatprep.subr.mxu0 0.0
    %2238 = vmatpush1.msra.mxu0 0.0
    %2239 = vmatprep.subr.mxu0 0.0
    %2240 = vmatpush1.msra.mxu0 0.0
    %2241 = vmatprep.subr.mxu0 0.0
    %2242 = vmatpush1.msra.mxu0 0.0
    %2243 = vmatprep.subr.mxu0 0.0
    %2244 = vmatpush1.msra.mxu0 0.0
    %2245 = vmatprep.subr.mxu0 0.0
    %2246 = vmatpush1.msra.mxu0 0.0
    %2247 = vmatprep.subr.mxu0 0.0
    %2248 = vmatpush1.msra.mxu0 0.0
    %2249 = vmatprep.subr.mxu0 0.0
    %2250 = vmatpush1.msra.mxu0 0.0
    %2251 = vmatprep.subr.mxu0 0.0
    %2252 = vmatpush1.msra.mxu0 0.0
    %2253 = vmatprep.subr.mxu0 0.0
    %2254 = vmatpush1.msra.mxu0 0.0
    %2255 = vmatprep.subr.mxu0 0.0
    %2256 = vmatpush1.msra.mxu0 0.0
    %2257 = vmatprep.subr.mxu0 0.0
    %2258 = vmatpush1.msra.mxu0 0.0
    %2259 = vmatprep.mubr.f32.mxu0 0.0
    %v2260 = vand.u32 %v623, 4294901760
    %v2261 = vsub.f32 %v623, %v2260
    %2262 = vmatmul.mubr.f32.gmra.mrb[0].mxu0 %v2261
    %v2263 = vpop.f32.mrb[0].mxu0
    %v2264 = vadd.f32 %v2159, %v2263
    %v2265 = vpop.f32.mrb[0].mxu0
    %v2266 = vadd.f32 %v2161, %v2265
    %2267 = vdwg.mxu0
    %v2268 = vand.u32 %v572, 4294901760
    %2269 = vmatprep.subr.mxu0 %v2268
    %v2270 = vand.u32 %v571, 4294901760
    %2271 = vmatpush1.msra.mxu0 %v2270
    %v2272 = vand.u32 %v578, 4294901760
    %2273 = vmatprep.subr.mxu0 %v2272
    %v2274 = vand.u32 %v577, 4294901760
    %2275 = vmatpush1.msra.mxu0 %v2274
    %v2276 = vand.u32 %v584, 4294901760
    %2277 = vmatprep.subr.mxu0 %v2276
    %v2278 = vand.u32 %v583, 4294901760
    %2279 = vmatpush1.msra.mxu0 %v2278
    %v2280 = vand.u32 %v590, 4294901760
    %2281 = vmatprep.subr.mxu0 %v2280
    %v2282 = vand.u32 %v589, 4294901760
    %2283 = vmatpush1.msra.mxu0 %v2282
    %v2284 = vand.u32 %v596, 4294901760
    %2285 = vmatprep.subr.mxu0 %v2284
    %v2286 = vand.u32 %v595, 4294901760
    %2287 = vmatpush1.msra.mxu0 %v2286
    %v2288 = vand.u32 %v602, 4294901760
    %2289 = vmatprep.subr.mxu0 %v2288
    %v2290 = vand.u32 %v601, 4294901760
    %2291 = vmatpush1.msra.mxu0 %v2290
    %v2292 = vand.u32 %v608, 4294901760
    %2293 = vmatprep.subr.mxu0 %v2292
    %v2294 = vand.u32 %v607, 4294901760
    %2295 = vmatpush1.msra.mxu0 %v2294
    %v2296 = vand.u32 %v614, 4294901760
    %2297 = vmatprep.subr.mxu0 %v2296
    %v2298 = vand.u32 %v613, 4294901760
    %2299 = vmatpush1.msra.mxu0 %v2298
    %2300 = vmatprep.subr.mxu0 0.0
    %2301 = vmatpush1.msra.mxu0 0.0
    %2302 = vmatprep.subr.mxu0 0.0
    %2303 = vmatpush1.msra.mxu0 0.0
    %2304 = vmatprep.subr.mxu0 0.0
    %2305 = vmatpush1.msra.mxu0 0.0
    %2306 = vmatprep.subr.mxu0 0.0
    %2307 = vmatpush1.msra.mxu0 0.0
    %2308 = vmatprep.subr.mxu0 0.0
    %2309 = vmatpush1.msra.mxu0 0.0
    %2310 = vmatprep.subr.mxu0 0.0
    %2311 = vmatpush1.msra.mxu0 0.0
    %2312 = vmatprep.subr.mxu0 0.0
    %2313 = vmatpush1.msra.mxu0 0.0
    %2314 = vmatprep.subr.mxu0 0.0
    %2315 = vmatpush1.msra.mxu0 0.0
    %2316 = vmatprep.subr.mxu0 0.0
    %2317 = vmatpush1.msra.mxu0 0.0
    %2318 = vmatprep.subr.mxu0 0.0
    %2319 = vmatpush1.msra.mxu0 0.0
    %2320 = vmatprep.subr.mxu0 0.0
    %2321 = vmatpush1.msra.mxu0 0.0
    %2322 = vmatprep.subr.mxu0 0.0
    %2323 = vmatpush1.msra.mxu0 0.0
    %2324 = vmatprep.subr.mxu0 0.0
    %2325 = vmatpush1.msra.mxu0 0.0
    %2326 = vmatprep.subr.mxu0 0.0
    %2327 = vmatpush1.msra.mxu0 0.0
    %2328 = vmatprep.subr.mxu0 0.0
    %2329 = vmatpush1.msra.mxu0 0.0
    %2330 = vmatprep.subr.mxu0 0.0
    %2331 = vmatpush1.msra.mxu0 0.0
    %2332 = vmatprep.subr.mxu0 0.0
    %2333 = vmatpush1.msra.mxu0 0.0
    %2334 = vmatprep.subr.mxu0 0.0
    %2335 = vmatpush1.msra.mxu0 0.0
    %2336 = vmatprep.subr.mxu0 0.0
    %2337 = vmatpush1.msra.mxu0 0.0
    %2338 = vmatprep.subr.mxu0 0.0
    %2339 = vmatpush1.msra.mxu0 0.0
    %2340 = vmatprep.subr.mxu0 0.0
    %2341 = vmatpush1.msra.mxu0 0.0
    %2342 = vmatprep.subr.mxu0 0.0
    %2343 = vmatpush1.msra.mxu0 0.0
    %2344 = vmatprep.subr.mxu0 0.0
    %2345 = vmatpush1.msra.mxu0 0.0
    %2346 = vmatprep.subr.mxu0 0.0
    %2347 = vmatpush1.msra.mxu0 0.0
    %2348 = vmatprep.mubr.f32.mxu0 0.0
    %v2349 = vand.u32 %v623, 4294901760
    %v2350 = vsub.f32 %v623, %v2349
    %v2351 = vand.u32 %v2350, 4294901760
    %2352 = vmatmul.mubr.f32.gmra.mrb[0].mxu0 %v2351
    %v2353 = vpop.f32.mrb[0].mxu0
    %v2354 = vadd.f32 %v2264, %v2353
    %v2355 = vpop.f32.mrb[0].mxu0
    %v2356 = vadd.f32 %v2266, %v2355
    %2357 = vdwg.mxu0
    %v2358 = vand.u32 %v572, 4294901760
    %v2359 = vsub.f32 %v572, %v2358
    %v2360 = vand.u32 %v2359, 4294901760
    %2361 = vmatprep.subr.mxu0 %v2360
    %v2362 = vand.u32 %v571, 4294901760
    %v2363 = vsub.f32 %v571, %v2362
    %v2364 = vand.u32 %v2363, 4294901760
    %2365 = vmatpush1.msra.mxu0 %v2364
    %v2366 = vand.u32 %v578, 4294901760
    %v2367 = vsub.f32 %v578, %v2366
    %v2368 = vand.u32 %v2367, 4294901760
    %2369 = vmatprep.subr.mxu0 %v2368
    %v2370 = vand.u32 %v577, 4294901760
    %v2371 = vsub.f32 %v577, %v2370
    %v2372 = vand.u32 %v2371, 4294901760
    %2373 = vmatpush1.msra.mxu0 %v2372
    %v2374 = vand.u32 %v584, 4294901760
    %v2375 = vsub.f32 %v584, %v2374
    %v2376 = vand.u32 %v2375, 4294901760
    %2377 = vmatprep.subr.mxu0 %v2376
    %v2378 = vand.u32 %v583, 4294901760
    %v2379 = vsub.f32 %v583, %v2378
    %v2380 = vand.u32 %v2379, 4294901760
    %2381 = vmatpush1.msra.mxu0 %v2380
    %v2382 = vand.u32 %v590, 4294901760
    %v2383 = vsub.f32 %v590, %v2382
    %v2384 = vand.u32 %v2383, 4294901760
    %2385 = vmatprep.subr.mxu0 %v2384
    %v2386 = vand.u32 %v589, 4294901760
    %v2387 = vsub.f32 %v589, %v2386
    %v2388 = vand.u32 %v2387, 4294901760
    %2389 = vmatpush1.msra.mxu0 %v2388
    %v2390 = vand.u32 %v596, 4294901760
    %v2391 = vsub.f32 %v596, %v2390
    %v2392 = vand.u32 %v2391, 4294901760
    %2393 = vmatprep.subr.mxu0 %v2392
    %v2394 = vand.u32 %v595, 4294901760
    %v2395 = vsub.f32 %v595, %v2394
    %v2396 = vand.u32 %v2395, 4294901760
    %2397 = vmatpush1.msra.mxu0 %v2396
    %v2398 = vand.u32 %v602, 4294901760
    %v2399 = vsub.f32 %v602, %v2398
    %v2400 = vand.u32 %v2399, 4294901760
    %2401 = vmatprep.subr.mxu0 %v2400
    %v2402 = vand.u32 %v601, 4294901760
    %v2403 = vsub.f32 %v601, %v2402
    %v2404 = vand.u32 %v2403, 4294901760
    %2405 = vmatpush1.msra.mxu0 %v2404
    %v2406 = vand.u32 %v608, 4294901760
    %v2407 = vsub.f32 %v608, %v2406
    %v2408 = vand.u32 %v2407, 4294901760
    %2409 = vmatprep.subr.mxu0 %v2408
    %v2410 = vand.u32 %v607, 4294901760
    %v2411 = vsub.f32 %v607, %v2410
    %v2412 = vand.u32 %v2411, 4294901760
    %2413 = vmatpush1.msra.mxu0 %v2412
    %v2414 = vand.u32 %v614, 4294901760
    %v2415 = vsub.f32 %v614, %v2414
    %v2416 = vand.u32 %v2415, 4294901760
    %2417 = vmatprep.subr.mxu0 %v2416
    %v2418 = vand.u32 %v613, 4294901760
    %v2419 = vsub.f32 %v613, %v2418
    %v2420 = vand.u32 %v2419, 4294901760
    %2421 = vmatpush1.msra.mxu0 %v2420
    %2422 = vmatprep.subr.mxu0 0.0
    %2423 = vmatpush1.msra.mxu0 0.0
    %2424 = vmatprep.subr.mxu0 0.0
    %2425 = vmatpush1.msra.mxu0 0.0
    %2426 = vmatprep.subr.mxu0 0.0
    %2427 = vmatpush1.msra.mxu0 0.0
    %2428 = vmatprep.subr.mxu0 0.0
    %2429 = vmatpush1.msra.mxu0 0.0
    %2430 = vmatprep.subr.mxu0 0.0
    %2431 = vmatpush1.msra.mxu0 0.0
    %2432 = vmatprep.subr.mxu0 0.0
    %2433 = vmatpush1.msra.mxu0 0.0
    %2434 = vmatprep.subr.mxu0 0.0
    %2435 = vmatpush1.msra.mxu0 0.0
    %2436 = vmatprep.subr.mxu0 0.0
    %2437 = vmatpush1.msra.mxu0 0.0
    %2438 = vmatprep.subr.mxu0 0.0
    %2439 = vmatpush1.msra.mxu0 0.0
    %2440 = vmatprep.subr.mxu0 0.0
    %2441 = vmatpush1.msra.mxu0 0.0
    %2442 = vmatprep.subr.mxu0 0.0
    %2443 = vmatpush1.msra.mxu0 0.0
    %2444 = vmatprep.subr.mxu0 0.0
    %2445 = vmatpush1.msra.mxu0 0.0
    %2446 = vmatprep.subr.mxu0 0.0
    %2447 = vmatpush1.msra.mxu0 0.0
    %2448 = vmatprep.subr.mxu0 0.0
    %2449 = vmatpush1.msra.mxu0 0.0
    %2450 = vmatprep.subr.mxu0 0.0
    %2451 = vmatpush1.msra.mxu0 0.0
    %2452 = vmatprep.subr.mxu0 0.0
    %2453 = vmatpush1.msra.mxu0 0.0
    %2454 = vmatprep.subr.mxu0 0.0
    %2455 = vmatpush1.msra.mxu0 0.0
    %2456 = vmatprep.subr.mxu0 0.0
    %2457 = vmatpush1.msra.mxu0 0.0
    %2458 = vmatprep.subr.mxu0 0.0
    %2459 = vmatpush1.msra.mxu0 0.0
    %2460 = vmatprep.subr.mxu0 0.0
    %2461 = vmatpush1.msra.mxu0 0.0
    %2462 = vmatprep.subr.mxu0 0.0
    %2463 = vmatpush1.msra.mxu0 0.0
    %2464 = vmatprep.subr.mxu0 0.0
    %2465 = vmatpush1.msra.mxu0 0.0
    %2466 = vmatprep.subr.mxu0 0.0
    %2467 = vmatpush1.msra.mxu0 0.0
    %2468 = vmatprep.subr.mxu0 0.0
    %2469 = vmatpush1.msra.mxu0 0.0
    %2470 = vmatprep.mubr.f32.mxu0 0.0
    %v2471 = vand.u32 %v623, 4294901760
    %2472 = vmatmul.mubr.f32.gmra.mrb[0].mxu0 %v2471
    %v2473 = vpop.f32.mrb[0].mxu0
    %v2474 = vadd.f32 %v2354, %v2473
    %v2475 = vpop.f32.mrb[0].mxu0
    %v2476 = vadd.f32 %v2356, %v2475
    %2477 = vdwg.mxu0
    %v2478 = vand.u32 %v572, 4294901760
    %2479 = vmatprep.subr.mxu0 %v2478
    %v2480 = vand.u32 %v571, 4294901760
    %2481 = vmatpush1.msra.mxu0 %v2480
    %v2482 = vand.u32 %v578, 4294901760
    %2483 = vmatprep.subr.mxu0 %v2482
    %v2484 = vand.u32 %v577, 4294901760
    %2485 = vmatpush1.msra.mxu0 %v2484
    %v2486 = vand.u32 %v584, 4294901760
    %2487 = vmatprep.subr.mxu0 %v2486
    %v2488 = vand.u32 %v583, 4294901760
    %2489 = vmatpush1.msra.mxu0 %v2488
    %v2490 = vand.u32 %v590, 4294901760
    %2491 = vmatprep.subr.mxu0 %v2490
    %v2492 = vand.u32 %v589, 4294901760
    %2493 = vmatpush1.msra.mxu0 %v2492
    %v2494 = vand.u32 %v596, 4294901760
    %2495 = vmatprep.subr.mxu0 %v2494
    %v2496 = vand.u32 %v595, 4294901760
    %2497 = vmatpush1.msra.mxu0 %v2496
    %v2498 = vand.u32 %v602, 4294901760
    %2499 = vmatprep.subr.mxu0 %v2498
    %v2500 = vand.u32 %v601, 4294901760
    %2501 = vmatpush1.msra.mxu0 %v2500
    %v2502 = vand.u32 %v608, 4294901760
    %2503 = vmatprep.subr.mxu0 %v2502
    %v2504 = vand.u32 %v607, 4294901760
    %2505 = vmatpush1.msra.mxu0 %v2504
    %v2506 = vand.u32 %v614, 4294901760
    %2507 = vmatprep.subr.mxu0 %v2506
    %v2508 = vand.u32 %v613, 4294901760
    %2509 = vmatpush1.msra.mxu0 %v2508
    %2510 = vmatprep.subr.mxu0 0.0
    %2511 = vmatpush1.msra.mxu0 0.0
    %2512 = vmatprep.subr.mxu0 0.0
    %2513 = vmatpush1.msra.mxu0 0.0
    %2514 = vmatprep.subr.mxu0 0.0
    %2515 = vmatpush1.msra.mxu0 0.0
    %2516 = vmatprep.subr.mxu0 0.0
    %2517 = vmatpush1.msra.mxu0 0.0
    %2518 = vmatprep.subr.mxu0 0.0
    %2519 = vmatpush1.msra.mxu0 0.0
    %2520 = vmatprep.subr.mxu0 0.0
    %2521 = vmatpush1.msra.mxu0 0.0
    %2522 = vmatprep.subr.mxu0 0.0
    %2523 = vmatpush1.msra.mxu0 0.0
    %2524 = vmatprep.subr.mxu0 0.0
    %2525 = vmatpush1.msra.mxu0 0.0
    %2526 = vmatprep.subr.mxu0 0.0
    %2527 = vmatpush1.msra.mxu0 0.0
    %2528 = vmatprep.subr.mxu0 0.0
    %2529 = vmatpush1.msra.mxu0 0.0
    %2530 = vmatprep.subr.mxu0 0.0
    %2531 = vmatpush1.msra.mxu0 0.0
    %2532 = vmatprep.subr.mxu0 0.0
    %2533 = vmatpush1.msra.mxu0 0.0
    %2534 = vmatprep.subr.mxu0 0.0
    %2535 = vmatpush1.msra.mxu0 0.0
    %2536 = vmatprep.subr.mxu0 0.0
    %2537 = vmatpush1.msra.mxu0 0.0
    %2538 = vmatprep.subr.mxu0 0.0
    %2539 = vmatpush1.msra.mxu0 0.0
    %2540 = vmatprep.subr.mxu0 0.0
    %2541 = vmatpush1.msra.mxu0 0.0
    %2542 = vmatprep.subr.mxu0 0.0
    %2543 = vmatpush1.msra.mxu0 0.0
    %2544 = vmatprep.subr.mxu0 0.0
    %2545 = vmatpush1.msra.mxu0 0.0
    %2546 = vmatprep.subr.mxu0 0.0
    %2547 = vmatpush1.msra.mxu0 0.0
    %2548 = vmatprep.subr.mxu0 0.0
    %2549 = vmatpush1.msra.mxu0 0.0
    %2550 = vmatprep.subr.mxu0 0.0
    %2551 = vmatpush1.msra.mxu0 0.0
    %2552 = vmatprep.subr.mxu0 0.0
    %2553 = vmatpush1.msra.mxu0 0.0
    %2554 = vmatprep.subr.mxu0 0.0
    %2555 = vmatpush1.msra.mxu0 0.0
    %2556 = vmatprep.subr.mxu0 0.0
    %2557 = vmatpush1.msra.mxu0 0.0
    %2558 = vmatprep.mubr.f32.mxu0 0.0
    %v2559 = vand.u32 %v623, 4294901760
    %2560 = vmatmul.mubr.f32.gmra.mrb[0].mxu0 %v2559
    %v2561 = vpop.f32.mrb[0].mxu0
    %v2562 = vadd.f32 %v2474, %v2561
    %v2563 = vpop.f32.mrb[0].mxu0
    %v2564 = vadd.f32 %v2476, %v2563
    %2565 = vdwg.mxu0
    %v2566 = vmax.f32 %v1268, 0.0
    %v2567 = vmax.f32 %v1270, 0.0
    %v2568 = vmax.f32 %v1915, 0.0
    %v2569 = vmax.f32 %v1917, 0.0
    %v2570 = vmax.f32 %v2562, 0.0
    %v2571 = vmax.f32 %v2564, 0.0
    %2572 = vrot.lane.b32.xlu0 %v2566, 127
    %v2573 = vpop.permute.xlu0 %2572
    %2574 = vrot.lane.b32.xlu0 %v2567, 127
    %v2575 = vpop.permute.xlu0 %2574
    %2576 = vrot.lane.b32.xlu0 %v2568, 127
    %v2577 = vpop.permute.xlu0 %2576
    %2578 = vrot.lane.b32.xlu0 %v2569, 127
    %v2579 = vpop.permute.xlu0 %2578
    %2580 = vrot.lane.b32.xlu0 %v2570, 127
    %v2581 = vpop.permute.xlu0 %2580
    %2582 = vrot.lane.b32.xlu0 %v2571, 127
    %v2583 = vpop.permute.xlu0 %2582
    %v2584 = vsel %vm59, %v2581, %v2583
    %v2585 = vsel %vm59, %v2579, %v2581
    %v2586 = vsel %vm59, %v2577, %v2579
    %v2587 = vsel %vm59, %v2575, %v2577
    %v2588 = vsel %vm59, %v2573, %v2575
    %v2589 = vsel %vm59, %v2583, %v2573
    %v2590 = vmax.f32 %v2566, %v2588
    %v2591 = vmax.f32 %v2567, %v2587
    %v2592 = vmax.f32 %v2568, %v2586
    %v2593 = vmax.f32 %v2569, %v2585
    %v2594 = vmax.f32 %v2570, %v2584
    %v2595 = vmax.f32 %v2571, %v2589
    %2596 = vrot.lane.b32.xlu0 %v2566, 126
    %v2597 = vpop.permute.xlu0 %2596
    %2598 = vrot.lane.b32.xlu0 %v2567, 126
    %v2599 = vpop.permute.xlu0 %2598
    %2600 = vrot.lane.b32.xlu0 %v2568, 126
    %v2601 = vpop.permute.xlu0 %2600
    %2602 = vrot.lane.b32.xlu0 %v2569, 126
    %v2603 = vpop.permute.xlu0 %2602
    %2604 = vrot.lane.b32.xlu0 %v2570, 126
    %v2605 = vpop.permute.xlu0 %2604
    %2606 = vrot.lane.b32.xlu0 %v2571, 126
    %v2607 = vpop.permute.xlu0 %2606
    %v2608 = vsel %vm102, %v2605, %v2607
    %v2609 = vsel %vm102, %v2603, %v2605
    %v2610 = vsel %vm102, %v2601, %v2603
    %v2611 = vsel %vm102, %v2599, %v2601
    %v2612 = vsel %vm102, %v2597, %v2599
    %v2613 = vsel %vm102, %v2607, %v2597
    %v2614 = vmax.f32 %v2590, %v2612
    %v2615 = vmax.f32 %v2591, %v2611
    %v2616 = vmax.f32 %v2592, %v2610
    %v2617 = vmax.f32 %v2593, %v2609
    %v2618 = vmax.f32 %v2594, %v2608
    %v2619 = vmax.f32 %v2595, %v2613
    %2620 = vrot.lane.b32.xlu0 %v2566, 125
    %v2621 = vpop.permute.xlu0 %2620
    %2622 = vrot.lane.b32.xlu0 %v2567, 125
    %v2623 = vpop.permute.xlu0 %2622
    %2624 = vrot.lane.b32.xlu0 %v2568, 125
    %v2625 = vpop.permute.xlu0 %2624
    %2626 = vrot.lane.b32.xlu0 %v2569, 125
    %v2627 = vpop.permute.xlu0 %2626
    %2628 = vrot.lane.b32.xlu0 %v2570, 125
    %v2629 = vpop.permute.xlu0 %2628
    %2630 = vrot.lane.b32.xlu0 %v2571, 125
    %v2631 = vpop.permute.xlu0 %2630
    %v2632 = vsel %vm127, %v2629, %v2631
    %v2633 = vsel %vm127, %v2627, %v2629
    %v2634 = vsel %vm127, %v2625, %v2627
    %v2635 = vsel %vm127, %v2623, %v2625
    %v2636 = vsel %vm127, %v2621, %v2623
    %v2637 = vsel %vm127, %v2631, %v2621
    %v2638 = vmax.f32 %v2614, %v2636
    %v2639 = vmax.f32 %v2615, %v2635
    %v2640 = vmax.f32 %v2616, %v2634
    %v2641 = vmax.f32 %v2617, %v2633
    %v2642 = vmax.f32 %v2618, %v2632
    %v2643 = vmax.f32 %v2619, %v2637
    %2644 = vrot.lane.b32.xlu0 %v2638, 110
    %v2645 = vpop.permute.xlu0 %2644
    %2646 = vrot.lane.b32.xlu0 %v2639, 110
    %v2647 = vpop.permute.xlu0 %2646
    %2648 = vrot.lane.b32.xlu0 %v2640, 110
    %v2649 = vpop.permute.xlu0 %2648
    %2650 = vrot.lane.b32.xlu0 %v2641, 110
    %v2651 = vpop.permute.xlu0 %2650
    %2652 = vrot.lane.b32.xlu0 %v2642, 110
    %v2653 = vpop.permute.xlu0 %2652
    %2654 = vrot.lane.b32.xlu0 %v2643, 110
    %v2655 = vpop.permute.xlu0 %2654
    %v2656 = vsel %vm170, %v2653, %v2655
    %v2657 = vsel %vm170, %v2651, %v2653
    %v2658 = vsel %vm170, %v2649, %v2651
    %v2659 = vsel %vm170, %v2647, %v2649
    %v2660 = vsel %vm170, %v2645, %v2647
    %v2661 = vsel %vm170, %v2655, %v2645
    %v2662 = vmax.f32 %v2638, %v2660
    %v2663 = vmax.f32 %v2639, %v2659
    %v2664 = vmax.f32 %v2640, %v2658
    %v2665 = vmax.f32 %v2641, %v2657
    %v2666 = vmax.f32 %v2642, %v2656
    %v2667 = vmax.f32 %v2643, %v2661
    %2668 = vrot.lane.b32.xlu0 %v2638, 92
    %v2669 = vpop.permute.xlu0 %2668
    %2670 = vrot.lane.b32.xlu0 %v2639, 92
    %v2671 = vpop.permute.xlu0 %2670
    %2672 = vrot.lane.b32.xlu0 %v2640, 92
    %v2673 = vpop.permute.xlu0 %2672
    %2674 = vrot.lane.b32.xlu0 %v2641, 92
    %v2675 = vpop.permute.xlu0 %2674
    %2676 = vrot.lane.b32.xlu0 %v2642, 92
    %v2677 = vpop.permute.xlu0 %2676
    %2678 = vrot.lane.b32.xlu0 %v2643, 92
    %v2679 = vpop.permute.xlu0 %2678
    %v2680 = vsel %vm306, %v2677, %v2679
    %v2681 = vsel %vm306, %v2675, %v2677
    %v2682 = vsel %vm306, %v2673, %v2675
    %v2683 = vsel %vm306, %v2671, %v2673
    %v2684 = vsel %vm306, %v2669, %v2671
    %v2685 = vsel %vm306, %v2679, %v2669
    %v2686 = vmax.f32 %v2662, %v2684
    %v2687 = vmax.f32 %v2663, %v2683
    %v2688 = vmax.f32 %v2664, %v2682
    %v2689 = vmax.f32 %v2665, %v2681
    %v2690 = vmax.f32 %v2666, %v2680
    %v2691 = vmax.f32 %v2667, %v2685
    %2692 = vrot.lane.b32.xlu0 %v2638, 74
    %v2693 = vpop.permute.xlu0 %2692
    %2694 = vrot.lane.b32.xlu0 %v2639, 74
    %v2695 = vpop.permute.xlu0 %2694
    %2696 = vrot.lane.b32.xlu0 %v2640, 74
    %v2697 = vpop.permute.xlu0 %2696
    %2698 = vrot.lane.b32.xlu0 %v2641, 74
    %v2699 = vpop.permute.xlu0 %2698
    %2700 = vrot.lane.b32.xlu0 %v2642, 74
    %v2701 = vpop.permute.xlu0 %2700
    %2702 = vrot.lane.b32.xlu0 %v2643, 74
    %v2703 = vpop.permute.xlu0 %2702
    %v2704 = vsel %vm442, %v2701, %v2703
    %v2705 = vsel %vm442, %v2699, %v2701
    %v2706 = vsel %vm442, %v2697, %v2699
    %v2707 = vsel %vm442, %v2695, %v2697
    %v2708 = vsel %vm442, %v2693, %v2695
    %v2709 = vsel %vm442, %v2703, %v2693
    %v2710 = vmax.f32 %v2686, %v2708
    %v2711 = vmax.f32 %v2687, %v2707
    %v2712 = vmax.f32 %v2688, %v2706
    %v2713 = vmax.f32 %v2689, %v2705
    %v2714 = vmax.f32 %v2690, %v2704
    %v2715 = vmax.f32 %v2691, %v2709
    %2716 = vst [vmem:[#allocation6] sm:$0xff] %v2710
    %2717 = vst [vmem:[#allocation6 + $0x8] sm:$0xff] %v2711
    %2718 = vst [vmem:[#allocation6 + $0x10] sm:$0xff] %v2712
    %2719 = vst [vmem:[#allocation6 + $0x18] sm:$0xff] %v2713
    %2720 = vst [vmem:[#allocation6 + $0x20] sm:$0xff] %v2714
    %2721 = vst [vmem:[#allocation6 + $0x28] sm:$0xff] %v2715
    // Predicated region
    $region18: #{tpu_custom_call.1} parent=1 // pred_check
      _
    $region19: #{tpu_custom_call.1} parent=1 // pred_check_branch
      %2723 = sbr.rel (0) target = $region21
    $region20: #{tpu_custom_call.1} parent=1 // pred_region
      %s2725 = ssub.s32 768, 768
      %2726 = vsyncadd [#allocation5], %s2725
      %s2728 = sshll.u32 [#allocation6], 4
      %s2729 = int_to_ptr.vmem [resolvable:$true] %s2728
      %2731 = dma.vmem_to_hbm [thread:$0]  %s2729, 768, %s3, [#allocation5]
    $region21: #{tpu_custom_call.1} parent=1 // pred_fallthru
      _
    // Predicated region
    $region22: #{tpu_custom_call.1} parent=1 // pred_check
      _
    $region23: #{tpu_custom_call.1} parent=1 // pred_check_branch
      %2733 = sbr.rel (0) target = $region25
    $region24: #{tpu_custom_call.1} parent=1 // pred_region
      %2734 = dma.done [#allocation5], 768
    $region25: #{tpu_custom_call.1} parent=1 // pred_fallthru
      _
    %2735 = vsyncpa [#allocation4], 1
    %2736 = vsyncpa [#allocation5], 1

</llo_original>
